<compile_context>
chip_gen: v7x
topology: tpu7x:2x2x1
jax: 0.10.0
libtpu: 0.0.40
codegen_flags: <defaults>
</compile_context>

<pallas_src>
import functools

import jax
import jax.numpy as jnp
from jax import lax
from jax.experimental import pallas as pl
from jax.experimental.pallas import tpu as pltpu

# ---------------- configuration (small, consistent with the module) ----------------
EMBED_DIM = 16
MODULE_DIM = 32
OUTPUT_DIM = 24
HOPS = 2
FEATURE_COUNT = 4
FEATURE_DIM = 32
FEATURE_SIZE = FEATURE_COUNT * FEATURE_DIM     # 128
HM = HOPS * MODULE_DIM                         # 64
VOCAB = 50
LANES = 128

B = 2          # batch
L = 8          # token sequence length
NF = 6         # number of feature rows provided (>= FEATURE_COUNT, sliced in forward)


# ------------------------- weight-slab row layout (static) -------------------------
def _ceil8(x):
    return (x + 7) // 8 * 8

R_WGB = 0                                  # [128,128] FiLM gamma|beta weights
R_BGB = _ceil8(R_WGB + FEATURE_SIZE)       # [1,128]   FiLM gamma|beta bias
R_WHR = _ceil8(R_BGB + 1)                  # [32,32]   GRU W_hr
R_WHZ = R_WHR + MODULE_DIM                 # [32,32]   GRU W_hz
R_WHN = R_WHZ + MODULE_DIM                 # [32,32]   GRU W_hn
R_BHN = R_WHN + MODULE_DIM                 # [1,32]    GRU b_hn
R_WHOP = _ceil8(R_BHN + 1)                 # [32,32]   folded hop linear (wk @ wproj)
R_BHOP = R_WHOP + MODULE_DIM               # [1,32]    folded hop bias
R_WD = _ceil8(R_BHOP + 1)                  # [32,128]  dense weight (lane-padded)
R_BD = R_WD + MODULE_DIM                   # [1,128]   dense bias   (lane-padded)
SLAB_ROWS = _ceil8(R_BD + 1)               # 320


# ---------------------------------------------------------------------------------
# One fused, gridless kernel: FiLM matmul, forward GRU recurrence with the
# memory_idx one-hot gather, the hops loop (folded attention + FiLM + residual
# ReLU), and the final (lane-padded) dense projection.  Everything lives in VMEM
# (~300 KB total); exactly 2 input DMAs + 1 output DMA.
# ---------------------------------------------------------------------------------
def memnet_kernel(w_ref, act_ref, out_ref, *, hops, seq_len, m):
    batch = out_ref.shape[0]

    # ---- FiLM: softmax/lane-concat done in the XLA prologue; here only the single
    #      lane-dense [B,128]x[128,128] matmul.  gamma/beta lane extracts happen now,
    #      before the GRU, so their XLU rotates overlap the serial recurrence.
    gb = jnp.dot(act_ref[0], w_ref[R_WGB:R_WGB + FEATURE_SIZE, :],
                 preferred_element_type=jnp.float32) + w_ref[R_BGB:R_BGB + 1, :]
    gammas = [gb[:, i * m:(i + 1) * m] + 1.0 for i in range(hops)]       # "+1" from ref
    betas = [gb[:, hops * m + i * m: hops * m + (i + 1) * m] for i in range(hops)]

    # ---- GRU hidden-side weights: one [M,M] block per gate so every per-step matmul
    #      result (and every per-gate input projection) sits at lane offset 0.
    whr = w_ref[R_WHR:R_WHR + m, 0:m]
    whz = w_ref[R_WHZ:R_WHZ + m, 0:m]
    whn = w_ref[R_WHN:R_WHN + m, 0:m]
    bhn = w_ref[R_BHN:R_BHN + 1, 0:m]

    h = jnp.zeros((batch, m), jnp.float32)
    h_sel = jnp.zeros((batch, m), jnp.float32)
    for t in range(seq_len):
        base = 1 + 4 * t
        xr = act_ref[base + 0][:, 0:m]    # emb@W_ir + b_ir + b_hr   (prologue)
        xz = act_ref[base + 1][:, 0:m]    # emb@W_iz + b_iz + b_hz
        xn = act_ref[base + 2][:, 0:m]    # emb@W_in + b_in
        st = act_ref[base + 3][:, 0:m]    # one-hot memory_idx mask (lane-broadcast)
        hr = jnp.dot(h, whr, preferred_element_type=jnp.float32)
        hz = jnp.dot(h, whz, preferred_element_type=jnp.float32)
        hn = jnp.dot(h, whn, preferred_element_type=jnp.float32)
        r = jax.nn.sigmoid(xr + hr)
        z = jax.nn.sigmoid(xz + hz)
        n = jnp.tanh(xn + r * (hn + bhn))
        h = (1.0 - z) * n + z * h
        # gather of the hidden state at the last non-zero token: one vreg FMA.
        h_sel = h_sel + st * h

    # ---- hops: attention collapses to one linear (softmax over a single key == 1,
    #      so alpha == 1 and x_linear/w_q/mlp-score are dead; wk@wproj pre-folded),
    #      then FiLM modulation + residual ReLU.
    memory = h_sel
    whop = w_ref[R_WHOP:R_WHOP + m, 0:m]
    bhop = w_ref[R_BHOP:R_BHOP + 1, 0:m]
    for i in range(hops):
        out = jnp.dot(memory, whop, preferred_element_type=jnp.float32) + bhop
        out = gammas[i] * out + betas[i]
        memory = jnp.maximum(out, 0.0) + memory

    # ---- final dense: weight/bias lane-padded to 128 -> unmasked lane-dense store;
    #      the [B, OUTPUT_DIM] slice is taken outside the kernel.
    out_ref[...] = jnp.dot(memory, w_ref[R_WD:R_WD + m, :],
                           preferred_element_type=jnp.float32) + w_ref[R_BD:R_BD + 1, :]


# ---------------------------------------------------------------------------------
# Parameter init (deterministic, synthetic) — mirrors the module's parameter set.
# ---------------------------------------------------------------------------------
def init_params(key):
    ks = jax.random.split(key, 24)
    s = 0.05
    nrm = lambda k, shape: (jax.random.normal(k, shape, jnp.float32) * s)
    p = {}
    p["embed"] = nrm(ks[0], (VOCAB, EMBED_DIM))
    p["wg"] = nrm(ks[1], (FEATURE_COUNT, FEATURE_DIM, HM))
    p["bg"] = nrm(ks[2], (1, HM))
    p["wb"] = nrm(ks[3], (FEATURE_COUNT, FEATURE_DIM, HM))
    p["bb"] = nrm(ks[4], (1, HM))
    # forward-direction GRU weights (gate order r, z, n); stored as [in, out]
    p["w_ih"] = nrm(ks[5], (3, EMBED_DIM, MODULE_DIM))
    p["w_hh"] = nrm(ks[6], (3, MODULE_DIM, MODULE_DIM))
    p["b_ih"] = nrm(ks[7], (3, 1, MODULE_DIM))
    p["b_hh"] = nrm(ks[8], (3, 1, MODULE_DIM))
    # x_linear / w_q / mlp-score are part of the module but provably dead (alpha==1);
    # kept here to document the parameter set, and exercised by the reference.
    p["wx"] = nrm(ks[9], (MODULE_DIM, MODULE_DIM))
    p["bx"] = nrm(ks[10], (1, MODULE_DIM))
    p["wk"] = nrm(ks[11], (MODULE_DIM, MODULE_DIM))
    p["bk"] = nrm(ks[12], (1, MODULE_DIM))
    p["wq"] = nrm(ks[13], (MODULE_DIM, MODULE_DIM))
    p["bq"] = nrm(ks[14], (1, MODULE_DIM))
    p["wmlp"] = nrm(ks[15], (1, 2 * MODULE_DIM))
    p["wproj"] = nrm(ks[16], (MODULE_DIM, MODULE_DIM))
    p["bproj"] = nrm(ks[17], (1, MODULE_DIM))
    p["wd"] = nrm(ks[18], (MODULE_DIM, OUTPUT_DIM))
    p["bd"] = nrm(ks[19], (1, OUTPUT_DIM))
    return p


def fold_params(p):
    """Exact algebraic folds + single pre-padded weight slab, built once."""
    m = MODULE_DIM
    # FiLM gamma|beta weights lane-concatenated -> [128, 128]; biases -> [128]
    w_gb = jnp.concatenate([p["wg"].reshape(FEATURE_SIZE, HM),
                            p["wb"].reshape(FEATURE_SIZE, HM)], axis=1)
    b_gb = jnp.concatenate([p["bg"], p["bb"]], axis=1)[0]
    # GRU: fold b_hh[r], b_hh[z] into the input-side bias (exact); b_hh[n] must stay
    # inside the r*(...) term.
    b_x_g = jnp.stack([p["b_ih"][0, 0] + p["b_hh"][0, 0],
                       p["b_ih"][1, 0] + p["b_hh"][1, 0],
                       p["b_ih"][2, 0]], axis=0)                       # [3, M]
    b_hn = p["b_hh"][2, 0]                                             # [M]
    # Hops: alpha == 1 exactly, so attention == proj(w_k(memory)); fold the linears.
    w_hop = jnp.dot(p["wk"], p["wproj"])                               # [M, M]
    b_hop = (jnp.dot(p["bk"], p["wproj"]) + p["bproj"])[0]             # [M]

    slab = jnp.zeros((SLAB_ROWS, LANES), jnp.float32)
    slab = slab.at[R_WGB:R_WGB + FEATURE_SIZE, :].set(w_gb)
    slab = slab.at[R_BGB, :].set(b_gb)
    slab = slab.at[R_WHR:R_WHR + m, :m].set(p["w_hh"][0])
    slab = slab.at[R_WHZ:R_WHZ + m, :m].set(p["w_hh"][1])
    slab = slab.at[R_WHN:R_WHN + m, :m].set(p["w_hh"][2])
    slab = slab.at[R_BHN, :m].set(b_hn)
    slab = slab.at[R_WHOP:R_WHOP + m, :m].set(w_hop)
    slab = slab.at[R_BHOP, :m].set(b_hop)
    slab = slab.at[R_WD:R_WD + m, :OUTPUT_DIM].set(p["wd"])
    slab = slab.at[R_BD, :OUTPUT_DIM].set(p["bd"][0])

    return dict(embed=p["embed"], w_ih_g=p["w_ih"], b_x_g=b_x_g, slab=slab)


def mem_net_forward(fp, token, feature):
    batch, seq_len = token.shape

    # XLA prologue (tiny, fuses): FiLM softmax + lane concat, embedding gather,
    # per-gate GRU input projections (hoisted off the serial recurrence), and the
    # one-hot memory_idx mask — all packed into ONE activation slab (one DMA).
    sm = jax.nn.softmax(feature[:, :FEATURE_COUNT, :], axis=-1)
    sm = sm.reshape(batch, FEATURE_SIZE)                                   # [B, 128]

    emb = jnp.take(fp["embed"], token, axis=0)                             # [B, L, E]
    xg = jnp.einsum("ble,gem->lgbm", emb, fp["w_ih_g"])                    # [L, 3, B, M]
    xg = xg + fp["b_x_g"][None, :, None, :]

    last_idx = jnp.sum((token != 0).astype(jnp.int32), axis=-1) - 1        # [B]
    sel = (jnp.arange(seq_len, dtype=jnp.int32)[:, None] == last_idx[None, :])
    sel = jnp.broadcast_to(sel.astype(jnp.float32)[:, None, :, None],
                           (seq_len, 1, batch, MODULE_DIM))                # [L, 1, B, M]

    steps = jnp.concatenate([xg, sel], axis=1)                             # [L, 4, B, M]
    steps = steps.reshape(4 * seq_len, batch, MODULE_DIM)
    steps = jnp.pad(steps, ((0, 0), (0, 0), (0, LANES - MODULE_DIM)))      # [4L, B, 128]
    act = jnp.concatenate([sm[None], steps], axis=0)                       # [1+4L, B, 128]

    vmem = pl.BlockSpec(memory_space=pltpu.MemorySpace.VMEM)
    out = pl.pallas_call(
        functools.partial(memnet_kernel, hops=HOPS, seq_len=seq_len, m=MODULE_DIM),
        in_specs=[vmem, vmem],
        out_specs=vmem,
        out_shape=jax.ShapeDtypeStruct((batch, LANES), jnp.float32),
    )(fp["slab"], act)
    return out[:, :OUTPUT_DIM]


# ---------------------------------------------------------------------------------
# Pure-JAX reference (unfolded, full attention path) for a correctness check.
# ---------------------------------------------------------------------------------
def mem_net_reference(p, token, feature):
    batch = token.shape[0]
    sm = jax.nn.softmax(feature, axis=2)[:, :FEATURE_COUNT, :].reshape(batch, FEATURE_SIZE)
    gamma = (sm @ p["wg"].reshape(FEATURE_SIZE, HM) + p["bg"]).reshape(batch, HOPS, MODULE_DIM) + 1.0
    beta = (sm @ p["wb"].reshape(FEATURE_SIZE, HM) + p["bb"]).reshape(batch, HOPS, MODULE_DIM)

    last_idx = jnp.sum((token != 0).astype(jnp.int32), axis=-1) - 1
    emb = p["embed"][token]                                                  # [B, L, E]

    def cell(h, x_t):
        r = jax.nn.sigmoid(x_t @ p["w_ih"][0] + p["b_ih"][0] + h @ p["w_hh"][0] + p["b_hh"][0])
        z = jax.nn.sigmoid(x_t @ p["w_ih"][1] + p["b_ih"][1] + h @ p["w_hh"][1] + p["b_hh"][1])
        n = jnp.tanh(x_t @ p["w_ih"][2] + p["b_ih"][2] + r * (h @ p["w_hh"][2] + p["b_hh"][2]))
        h = (1.0 - z) * n + z * h
        return h, h

    h0 = jnp.zeros((batch, MODULE_DIM), jnp.float32)
    _, hs = lax.scan(cell, h0, jnp.transpose(emb, (1, 0, 2)))                # [L, B, M]
    valid = last_idx >= 0
    memory = jnp.where(valid[:, None],
                       hs[jnp.maximum(last_idx, 0), jnp.arange(batch)], 0.0)

    for i in range(HOPS):
        x = memory @ p["wx"] + p["bx"]
        kx = memory @ p["wk"] + p["bk"]
        qx = x @ p["wq"] + p["bq"]
        score = jnp.tanh(jnp.sum(jnp.concatenate([kx, qx], axis=-1) * p["wmlp"],
                                 axis=-1, keepdims=True))
        alpha = jax.nn.softmax(score, axis=-1)       # softmax over a single key == 1
        out = (alpha * kx) @ p["wproj"] + p["bproj"]
        out = gamma[:, i, :] * out + beta[:, i, :]
        memory = jnp.maximum(out, 0.0) + memory
    return memory @ p["wd"] + p["bd"]


if __name__ == "__main__":
    key = jax.random.PRNGKey(0)
    kp, kt, kf = jax.random.split(key, 3)

    params = init_params(kp)
    fp = fold_params(params)

    # tokens: non-zero prefix followed by zero padding (at least one non-zero per row)
    lengths = jnp.array([5, 8], dtype=jnp.int32)
    rand_tok = jax.random.randint(kt, (B, L), 1, VOCAB, dtype=jnp.int32)
    positions = jnp.arange(L, dtype=jnp.int32)[None, :]
    token = jnp.where(positions < lengths[:, None], rand_tok, 0)

    feature = jax.random.normal(kf, (B, NF, FEATURE_DIM), jnp.float32)

    out = jax.jit(mem_net_forward)(fp, token, feature)
    out = jax.block_until_ready(out)
    assert out.shape == (B, OUTPUT_DIM)
    assert bool(jnp.all(jnp.isfinite(out)))

    ref = mem_net_reference(params, token, feature)
    assert bool(jnp.allclose(out, ref, atol=1e-4, rtol=1e-4)), "kernel/reference mismatch"
    print("KERNEL_OK")
</pallas_src>

<mosaic_0001>
module attributes {stable_mosaic.version = 11 : i64} {
  func.func @memnet_kernel(%arg0: memref<320x128xf32, #tpu.memory_space<vmem>>, %arg1: memref<33x2x128xf32, #tpu.memory_space<vmem>>, %arg2: memref<2x128xf32, #tpu.memory_space<vmem>>) attributes {dimension_semantics = [], scalar_prefetch = 0 : i64, scratch_operands = 0 : i64, tpu.core_type = #tpu.core_type<tc>} {
    %c0 = arith.constant 0 : index
    %c0_0 = arith.constant 0 : index
    %c0_1 = arith.constant 0 : index
    %0 = vector.load %arg1[%c0, %c0_0, %c0_1] : memref<33x2x128xf32, #tpu.memory_space<vmem>>, vector<1x2x128xf32>
    %1 = vector.shape_cast %0 : vector<1x2x128xf32> to vector<2x128xf32>
    %c0_2 = arith.constant 0 : index
    %c0_3 = arith.constant 0 : index
    %2 = vector.load %arg0[%c0_2, %c0_3] : memref<320x128xf32, #tpu.memory_space<vmem>>, vector<128x128xf32>
    %cst = arith.constant dense<0.000000e+00> : vector<2x128xf32>
    %3 = tpu.matmul %1, %2, %cst {dimension_numbers = #tpu.dot_dimension_numbers<[1], [0], [0], [1], [0, 0, 1, 1], [], []>} : vector<2x128xf32>, vector<128x128xf32>, vector<2x128xf32> -> vector<2x128xf32>
    %c128 = arith.constant 128 : index
    %c0_4 = arith.constant 0 : index
    %4 = vector.load %arg0[%c128, %c0_4] : memref<320x128xf32, #tpu.memory_space<vmem>>, vector<1x128xf32>
    %5 = vector.broadcast %4 : vector<1x128xf32> to vector<2x128xf32>
    %6 = arith.addf %3, %5 : vector<2x128xf32>
    %7 = vector.extract_strided_slice %6 {offsets = [0, 0], sizes = [2, 32], strides = [1, 1]} : vector<2x128xf32> to vector<2x32xf32>
    %cst_5 = arith.constant 1.000000e+00 : f32
    %8 = vector.broadcast %cst_5 : f32 to vector<2x32xf32>
    %9 = arith.addf %7, %8 : vector<2x32xf32>
    %10 = vector.extract_strided_slice %6 {offsets = [0, 32], sizes = [2, 32], strides = [1, 1]} : vector<2x128xf32> to vector<2x32xf32>
    %cst_6 = arith.constant 1.000000e+00 : f32
    %11 = vector.broadcast %cst_6 : f32 to vector<2x32xf32>
    %12 = arith.addf %10, %11 : vector<2x32xf32>
    %13 = vector.extract_strided_slice %6 {offsets = [0, 64], sizes = [2, 32], strides = [1, 1]} : vector<2x128xf32> to vector<2x32xf32>
    %14 = vector.extract_strided_slice %6 {offsets = [0, 96], sizes = [2, 32], strides = [1, 1]} : vector<2x128xf32> to vector<2x32xf32>
    %c136 = arith.constant 136 : index
    %c0_7 = arith.constant 0 : index
    %15 = vector.load %arg0[%c136, %c0_7] : memref<320x128xf32, #tpu.memory_space<vmem>>, vector<32x32xf32>
    %c168 = arith.constant 168 : index
    %c0_8 = arith.constant 0 : index
    %16 = vector.load %arg0[%c168, %c0_8] : memref<320x128xf32, #tpu.memory_space<vmem>>, vector<32x32xf32>
    %c200 = arith.constant 200 : index
    %c0_9 = arith.constant 0 : index
    %17 = vector.load %arg0[%c200, %c0_9] : memref<320x128xf32, #tpu.memory_space<vmem>>, vector<32x32xf32>
    %c232 = arith.constant 232 : index
    %c0_10 = arith.constant 0 : index
    %18 = vector.load %arg0[%c232, %c0_10] : memref<320x128xf32, #tpu.memory_space<vmem>>, vector<1x32xf32>
    %cst_11 = arith.constant 0.000000e+00 : f32
    %19 = vector.broadcast %cst_11 : f32 to vector<2x32xf32>
    %cst_12 = arith.constant 0.000000e+00 : f32
    %20 = vector.broadcast %cst_12 : f32 to vector<2x32xf32>
    %c1 = arith.constant 1 : index
    %c0_13 = arith.constant 0 : index
    %c0_14 = arith.constant 0 : index
    %21 = vector.load %arg1[%c1, %c0_13, %c0_14] : memref<33x2x128xf32, #tpu.memory_space<vmem>>, vector<1x2x128xf32>
    %22 = vector.shape_cast %21 : vector<1x2x128xf32> to vector<2x128xf32>
    %23 = vector.extract_strided_slice %22 {offsets = [0, 0], sizes = [2, 32], strides = [1, 1]} : vector<2x128xf32> to vector<2x32xf32>
    %c2 = arith.constant 2 : index
    %c0_15 = arith.constant 0 : index
    %c0_16 = arith.constant 0 : index
    %24 = vector.load %arg1[%c2, %c0_15, %c0_16] : memref<33x2x128xf32, #tpu.memory_space<vmem>>, vector<1x2x128xf32>
    %25 = vector.shape_cast %24 : vector<1x2x128xf32> to vector<2x128xf32>
    %26 = vector.extract_strided_slice %25 {offsets = [0, 0], sizes = [2, 32], strides = [1, 1]} : vector<2x128xf32> to vector<2x32xf32>
    %c3 = arith.constant 3 : index
    %c0_17 = arith.constant 0 : index
    %c0_18 = arith.constant 0 : index
    %27 = vector.load %arg1[%c3, %c0_17, %c0_18] : memref<33x2x128xf32, #tpu.memory_space<vmem>>, vector<1x2x128xf32>
    %28 = vector.shape_cast %27 : vector<1x2x128xf32> to vector<2x128xf32>
    %29 = vector.extract_strided_slice %28 {offsets = [0, 0], sizes = [2, 32], strides = [1, 1]} : vector<2x128xf32> to vector<2x32xf32>
    %c4 = arith.constant 4 : index
    %c0_19 = arith.constant 0 : index
    %c0_20 = arith.constant 0 : index
    %30 = vector.load %arg1[%c4, %c0_19, %c0_20] : memref<33x2x128xf32, #tpu.memory_space<vmem>>, vector<1x2x128xf32>
    %31 = vector.shape_cast %30 : vector<1x2x128xf32> to vector<2x128xf32>
    %32 = vector.extract_strided_slice %31 {offsets = [0, 0], sizes = [2, 32], strides = [1, 1]} : vector<2x128xf32> to vector<2x32xf32>
    %cst_21 = arith.constant dense<0.000000e+00> : vector<2x32xf32>
    %33 = tpu.matmul %19, %15, %cst_21 {dimension_numbers = #tpu.dot_dimension_numbers<[1], [0], [0], [1], [0, 0, 1, 1], [], []>} : vector<2x32xf32>, vector<32x32xf32>, vector<2x32xf32> -> vector<2x32xf32>
    %cst_22 = arith.constant dense<0.000000e+00> : vector<2x32xf32>
    %34 = tpu.matmul %19, %16, %cst_22 {dimension_numbers = #tpu.dot_dimension_numbers<[1], [0], [0], [1], [0, 0, 1, 1], [], []>} : vector<2x32xf32>, vector<32x32xf32>, vector<2x32xf32> -> vector<2x32xf32>
    %cst_23 = arith.constant dense<0.000000e+00> : vector<2x32xf32>
    %35 = tpu.matmul %19, %17, %cst_23 {dimension_numbers = #tpu.dot_dimension_numbers<[1], [0], [0], [1], [0, 0, 1, 1], [], []>} : vector<2x32xf32>, vector<32x32xf32>, vector<2x32xf32> -> vector<2x32xf32>
    %36 = arith.addf %23, %33 : vector<2x32xf32>
    %37 = arith.negf %36 : vector<2x32xf32>
    %38 = math.exp %37 : vector<2x32xf32>
    %cst_24 = arith.constant 1.000000e+00 : f32
    %39 = vector.broadcast %cst_24 : f32 to vector<2x32xf32>
    %40 = arith.addf %39, %38 : vector<2x32xf32>
    %41 = arith.divf %39, %40 : vector<2x32xf32>
    %42 = arith.addf %26, %34 : vector<2x32xf32>
    %43 = arith.negf %42 : vector<2x32xf32>
    %44 = math.exp %43 : vector<2x32xf32>
    %cst_25 = arith.constant 1.000000e+00 : f32
    %45 = vector.broadcast %cst_25 : f32 to vector<2x32xf32>
    %46 = arith.addf %45, %44 : vector<2x32xf32>
    %47 = arith.divf %45, %46 : vector<2x32xf32>
    %48 = vector.broadcast %18 : vector<1x32xf32> to vector<2x32xf32>
    %49 = arith.addf %35, %48 : vector<2x32xf32>
    %50 = arith.mulf %41, %49 : vector<2x32xf32>
    %51 = arith.addf %29, %50 : vector<2x32xf32>
    %52 = math.tanh %51 : vector<2x32xf32>
    %cst_26 = arith.constant 1.000000e+00 : f32
    %53 = vector.broadcast %cst_26 : f32 to vector<2x32xf32>
    %54 = arith.subf %53, %47 : vector<2x32xf32>
    %55 = arith.mulf %54, %52 : vector<2x32xf32>
    %56 = arith.mulf %47, %19 : vector<2x32xf32>
    %57 = arith.addf %55, %56 : vector<2x32xf32>
    %58 = arith.mulf %32, %57 : vector<2x32xf32>
    %59 = arith.addf %20, %58 : vector<2x32xf32>
    %c5 = arith.constant 5 : index
    %c0_27 = arith.constant 0 : index
    %c0_28 = arith.constant 0 : index
    %60 = vector.load %arg1[%c5, %c0_27, %c0_28] : memref<33x2x128xf32, #tpu.memory_space<vmem>>, vector<1x2x128xf32>
    %61 = vector.shape_cast %60 : vector<1x2x128xf32> to vector<2x128xf32>
    %62 = vector.extract_strided_slice %61 {offsets = [0, 0], sizes = [2, 32], strides = [1, 1]} : vector<2x128xf32> to vector<2x32xf32>
    %c6 = arith.constant 6 : index
    %c0_29 = arith.constant 0 : index
    %c0_30 = arith.constant 0 : index
    %63 = vector.load %arg1[%c6, %c0_29, %c0_30] : memref<33x2x128xf32, #tpu.memory_space<vmem>>, vector<1x2x128xf32>
    %64 = vector.shape_cast %63 : vector<1x2x128xf32> to vector<2x128xf32>
    %65 = vector.extract_strided_slice %64 {offsets = [0, 0], sizes = [2, 32], strides = [1, 1]} : vector<2x128xf32> to vector<2x32xf32>
    %c7 = arith.constant 7 : index
    %c0_31 = arith.constant 0 : index
    %c0_32 = arith.constant 0 : index
    %66 = vector.load %arg1[%c7, %c0_31, %c0_32] : memref<33x2x128xf32, #tpu.memory_space<vmem>>, vector<1x2x128xf32>
    %67 = vector.shape_cast %66 : vector<1x2x128xf32> to vector<2x128xf32>
    %68 = vector.extract_strided_slice %67 {offsets = [0, 0], sizes = [2, 32], strides = [1, 1]} : vector<2x128xf32> to vector<2x32xf32>
    %c8 = arith.constant 8 : index
    %c0_33 = arith.constant 0 : index
    %c0_34 = arith.constant 0 : index
    %69 = vector.load %arg1[%c8, %c0_33, %c0_34] : memref<33x2x128xf32, #tpu.memory_space<vmem>>, vector<1x2x128xf32>
    %70 = vector.shape_cast %69 : vector<1x2x128xf32> to vector<2x128xf32>
    %71 = vector.extract_strided_slice %70 {offsets = [0, 0], sizes = [2, 32], strides = [1, 1]} : vector<2x128xf32> to vector<2x32xf32>
    %cst_35 = arith.constant dense<0.000000e+00> : vector<2x32xf32>
    %72 = tpu.matmul %57, %15, %cst_35 {dimension_numbers = #tpu.dot_dimension_numbers<[1], [0], [0], [1], [0, 0, 1, 1], [], []>} : vector<2x32xf32>, vector<32x32xf32>, vector<2x32xf32> -> vector<2x32xf32>
    %cst_36 = arith.constant dense<0.000000e+00> : vector<2x32xf32>
    %73 = tpu.matmul %57, %16, %cst_36 {dimension_numbers = #tpu.dot_dimension_numbers<[1], [0], [0], [1], [0, 0, 1, 1], [], []>} : vector<2x32xf32>, vector<32x32xf32>, vector<2x32xf32> -> vector<2x32xf32>
    %cst_37 = arith.constant dense<0.000000e+00> : vector<2x32xf32>
    %74 = tpu.matmul %57, %17, %cst_37 {dimension_numbers = #tpu.dot_dimension_numbers<[1], [0], [0], [1], [0, 0, 1, 1], [], []>} : vector<2x32xf32>, vector<32x32xf32>, vector<2x32xf32> -> vector<2x32xf32>
    %75 = arith.addf %62, %72 : vector<2x32xf32>
    %76 = arith.negf %75 : vector<2x32xf32>
    %77 = math.exp %76 : vector<2x32xf32>
    %cst_38 = arith.constant 1.000000e+00 : f32
    %78 = vector.broadcast %cst_38 : f32 to vector<2x32xf32>
    %79 = arith.addf %78, %77 : vector<2x32xf32>
    %80 = arith.divf %78, %79 : vector<2x32xf32>
    %81 = arith.addf %65, %73 : vector<2x32xf32>
    %82 = arith.negf %81 : vector<2x32xf32>
    %83 = math.exp %82 : vector<2x32xf32>
    %cst_39 = arith.constant 1.000000e+00 : f32
    %84 = vector.broadcast %cst_39 : f32 to vector<2x32xf32>
    %85 = arith.addf %84, %83 : vector<2x32xf32>
    %86 = arith.divf %84, %85 : vector<2x32xf32>
    %87 = vector.broadcast %18 : vector<1x32xf32> to vector<2x32xf32>
    %88 = arith.addf %74, %87 : vector<2x32xf32>
    %89 = arith.mulf %80, %88 : vector<2x32xf32>
    %90 = arith.addf %68, %89 : vector<2x32xf32>
    %91 = math.tanh %90 : vector<2x32xf32>
    %cst_40 = arith.constant 1.000000e+00 : f32
    %92 = vector.broadcast %cst_40 : f32 to vector<2x32xf32>
    %93 = arith.subf %92, %86 : vector<2x32xf32>
    %94 = arith.mulf %93, %91 : vector<2x32xf32>
    %95 = arith.mulf %86, %57 : vector<2x32xf32>
    %96 = arith.addf %94, %95 : vector<2x32xf32>
    %97 = arith.mulf %71, %96 : vector<2x32xf32>
    %98 = arith.addf %59, %97 : vector<2x32xf32>
    %c9 = arith.constant 9 : index
    %c0_41 = arith.constant 0 : index
    %c0_42 = arith.constant 0 : index
    %99 = vector.load %arg1[%c9, %c0_41, %c0_42] : memref<33x2x128xf32, #tpu.memory_space<vmem>>, vector<1x2x128xf32>
    %100 = vector.shape_cast %99 : vector<1x2x128xf32> to vector<2x128xf32>
    %101 = vector.extract_strided_slice %100 {offsets = [0, 0], sizes = [2, 32], strides = [1, 1]} : vector<2x128xf32> to vector<2x32xf32>
    %c10 = arith.constant 10 : index
    %c0_43 = arith.constant 0 : index
    %c0_44 = arith.constant 0 : index
    %102 = vector.load %arg1[%c10, %c0_43, %c0_44] : memref<33x2x128xf32, #tpu.memory_space<vmem>>, vector<1x2x128xf32>
    %103 = vector.shape_cast %102 : vector<1x2x128xf32> to vector<2x128xf32>
    %104 = vector.extract_strided_slice %103 {offsets = [0, 0], sizes = [2, 32], strides = [1, 1]} : vector<2x128xf32> to vector<2x32xf32>
    %c11 = arith.constant 11 : index
    %c0_45 = arith.constant 0 : index
    %c0_46 = arith.constant 0 : index
    %105 = vector.load %arg1[%c11, %c0_45, %c0_46] : memref<33x2x128xf32, #tpu.memory_space<vmem>>, vector<1x2x128xf32>
    %106 = vector.shape_cast %105 : vector<1x2x128xf32> to vector<2x128xf32>
    %107 = vector.extract_strided_slice %106 {offsets = [0, 0], sizes = [2, 32], strides = [1, 1]} : vector<2x128xf32> to vector<2x32xf32>
    %c12 = arith.constant 12 : index
    %c0_47 = arith.constant 0 : index
    %c0_48 = arith.constant 0 : index
    %108 = vector.load %arg1[%c12, %c0_47, %c0_48] : memref<33x2x128xf32, #tpu.memory_space<vmem>>, vector<1x2x128xf32>
    %109 = vector.shape_cast %108 : vector<1x2x128xf32> to vector<2x128xf32>
    %110 = vector.extract_strided_slice %109 {offsets = [0, 0], sizes = [2, 32], strides = [1, 1]} : vector<2x128xf32> to vector<2x32xf32>
    %cst_49 = arith.constant dense<0.000000e+00> : vector<2x32xf32>
    %111 = tpu.matmul %96, %15, %cst_49 {dimension_numbers = #tpu.dot_dimension_numbers<[1], [0], [0], [1], [0, 0, 1, 1], [], []>} : vector<2x32xf32>, vector<32x32xf32>, vector<2x32xf32> -> vector<2x32xf32>
    %cst_50 = arith.constant dense<0.000000e+00> : vector<2x32xf32>
    %112 = tpu.matmul %96, %16, %cst_50 {dimension_numbers = #tpu.dot_dimension_numbers<[1], [0], [0], [1], [0, 0, 1, 1], [], []>} : vector<2x32xf32>, vector<32x32xf32>, vector<2x32xf32> -> vector<2x32xf32>
    %cst_51 = arith.constant dense<0.000000e+00> : vector<2x32xf32>
    %113 = tpu.matmul %96, %17, %cst_51 {dimension_numbers = #tpu.dot_dimension_numbers<[1], [0], [0], [1], [0, 0, 1, 1], [], []>} : vector<2x32xf32>, vector<32x32xf32>, vector<2x32xf32> -> vector<2x32xf32>
    %114 = arith.addf %101, %111 : vector<2x32xf32>
    %115 = arith.negf %114 : vector<2x32xf32>
    %116 = math.exp %115 : vector<2x32xf32>
    %cst_52 = arith.constant 1.000000e+00 : f32
    %117 = vector.broadcast %cst_52 : f32 to vector<2x32xf32>
    %118 = arith.addf %117, %116 : vector<2x32xf32>
    %119 = arith.divf %117, %118 : vector<2x32xf32>
    %120 = arith.addf %104, %112 : vector<2x32xf32>
    %121 = arith.negf %120 : vector<2x32xf32>
    %122 = math.exp %121 : vector<2x32xf32>
    %cst_53 = arith.constant 1.000000e+00 : f32
    %123 = vector.broadcast %cst_53 : f32 to vector<2x32xf32>
    %124 = arith.addf %123, %122 : vector<2x32xf32>
    %125 = arith.divf %123, %124 : vector<2x32xf32>
    %126 = vector.broadcast %18 : vector<1x32xf32> to vector<2x32xf32>
    %127 = arith.addf %113, %126 : vector<2x32xf32>
    %128 = arith.mulf %119, %127 : vector<2x32xf32>
    %129 = arith.addf %107, %128 : vector<2x32xf32>
    %130 = math.tanh %129 : vector<2x32xf32>
    %cst_54 = arith.constant 1.000000e+00 : f32
    %131 = vector.broadcast %cst_54 : f32 to vector<2x32xf32>
    %132 = arith.subf %131, %125 : vector<2x32xf32>
    %133 = arith.mulf %132, %130 : vector<2x32xf32>
    %134 = arith.mulf %125, %96 : vector<2x32xf32>
    %135 = arith.addf %133, %134 : vector<2x32xf32>
    %136 = arith.mulf %110, %135 : vector<2x32xf32>
    %137 = arith.addf %98, %136 : vector<2x32xf32>
    %c13 = arith.constant 13 : index
    %c0_55 = arith.constant 0 : index
    %c0_56 = arith.constant 0 : index
    %138 = vector.load %arg1[%c13, %c0_55, %c0_56] : memref<33x2x128xf32, #tpu.memory_space<vmem>>, vector<1x2x128xf32>
    %139 = vector.shape_cast %138 : vector<1x2x128xf32> to vector<2x128xf32>
    %140 = vector.extract_strided_slice %139 {offsets = [0, 0], sizes = [2, 32], strides = [1, 1]} : vector<2x128xf32> to vector<2x32xf32>
    %c14 = arith.constant 14 : index
    %c0_57 = arith.constant 0 : index
    %c0_58 = arith.constant 0 : index
    %141 = vector.load %arg1[%c14, %c0_57, %c0_58] : memref<33x2x128xf32, #tpu.memory_space<vmem>>, vector<1x2x128xf32>
    %142 = vector.shape_cast %141 : vector<1x2x128xf32> to vector<2x128xf32>
    %143 = vector.extract_strided_slice %142 {offsets = [0, 0], sizes = [2, 32], strides = [1, 1]} : vector<2x128xf32> to vector<2x32xf32>
    %c15 = arith.constant 15 : index
    %c0_59 = arith.constant 0 : index
    %c0_60 = arith.constant 0 : index
    %144 = vector.load %arg1[%c15, %c0_59, %c0_60] : memref<33x2x128xf32, #tpu.memory_space<vmem>>, vector<1x2x128xf32>
    %145 = vector.shape_cast %144 : vector<1x2x128xf32> to vector<2x128xf32>
    %146 = vector.extract_strided_slice %145 {offsets = [0, 0], sizes = [2, 32], strides = [1, 1]} : vector<2x128xf32> to vector<2x32xf32>
    %c16 = arith.constant 16 : index
    %c0_61 = arith.constant 0 : index
    %c0_62 = arith.constant 0 : index
    %147 = vector.load %arg1[%c16, %c0_61, %c0_62] : memref<33x2x128xf32, #tpu.memory_space<vmem>>, vector<1x2x128xf32>
    %148 = vector.shape_cast %147 : vector<1x2x128xf32> to vector<2x128xf32>
    %149 = vector.extract_strided_slice %148 {offsets = [0, 0], sizes = [2, 32], strides = [1, 1]} : vector<2x128xf32> to vector<2x32xf32>
    %cst_63 = arith.constant dense<0.000000e+00> : vector<2x32xf32>
    %150 = tpu.matmul %135, %15, %cst_63 {dimension_numbers = #tpu.dot_dimension_numbers<[1], [0], [0], [1], [0, 0, 1, 1], [], []>} : vector<2x32xf32>, vector<32x32xf32>, vector<2x32xf32> -> vector<2x32xf32>
    %cst_64 = arith.constant dense<0.000000e+00> : vector<2x32xf32>
    %151 = tpu.matmul %135, %16, %cst_64 {dimension_numbers = #tpu.dot_dimension_numbers<[1], [0], [0], [1], [0, 0, 1, 1], [], []>} : vector<2x32xf32>, vector<32x32xf32>, vector<2x32xf32> -> vector<2x32xf32>
    %cst_65 = arith.constant dense<0.000000e+00> : vector<2x32xf32>
    %152 = tpu.matmul %135, %17, %cst_65 {dimension_numbers = #tpu.dot_dimension_numbers<[1], [0], [0], [1], [0, 0, 1, 1], [], []>} : vector<2x32xf32>, vector<32x32xf32>, vector<2x32xf32> -> vector<2x32xf32>
    %153 = arith.addf %140, %150 : vector<2x32xf32>
    %154 = arith.negf %153 : vector<2x32xf32>
    %155 = math.exp %154 : vector<2x32xf32>
    %cst_66 = arith.constant 1.000000e+00 : f32
    %156 = vector.broadcast %cst_66 : f32 to vector<2x32xf32>
    %157 = arith.addf %156, %155 : vector<2x32xf32>
    %158 = arith.divf %156, %157 : vector<2x32xf32>
    %159 = arith.addf %143, %151 : vector<2x32xf32>
    %160 = arith.negf %159 : vector<2x32xf32>
    %161 = math.exp %160 : vector<2x32xf32>
    %cst_67 = arith.constant 1.000000e+00 : f32
    %162 = vector.broadcast %cst_67 : f32 to vector<2x32xf32>
    %163 = arith.addf %162, %161 : vector<2x32xf32>
    %164 = arith.divf %162, %163 : vector<2x32xf32>
    %165 = vector.broadcast %18 : vector<1x32xf32> to vector<2x32xf32>
    %166 = arith.addf %152, %165 : vector<2x32xf32>
    %167 = arith.mulf %158, %166 : vector<2x32xf32>
    %168 = arith.addf %146, %167 : vector<2x32xf32>
    %169 = math.tanh %168 : vector<2x32xf32>
    %cst_68 = arith.constant 1.000000e+00 : f32
    %170 = vector.broadcast %cst_68 : f32 to vector<2x32xf32>
    %171 = arith.subf %170, %164 : vector<2x32xf32>
    %172 = arith.mulf %171, %169 : vector<2x32xf32>
    %173 = arith.mulf %164, %135 : vector<2x32xf32>
    %174 = arith.addf %172, %173 : vector<2x32xf32>
    %175 = arith.mulf %149, %174 : vector<2x32xf32>
    %176 = arith.addf %137, %175 : vector<2x32xf32>
    %c17 = arith.constant 17 : index
    %c0_69 = arith.constant 0 : index
    %c0_70 = arith.constant 0 : index
    %177 = vector.load %arg1[%c17, %c0_69, %c0_70] : memref<33x2x128xf32, #tpu.memory_space<vmem>>, vector<1x2x128xf32>
    %178 = vector.shape_cast %177 : vector<1x2x128xf32> to vector<2x128xf32>
    %179 = vector.extract_strided_slice %178 {offsets = [0, 0], sizes = [2, 32], strides = [1, 1]} : vector<2x128xf32> to vector<2x32xf32>
    %c18 = arith.constant 18 : index
    %c0_71 = arith.constant 0 : index
    %c0_72 = arith.constant 0 : index
    %180 = vector.load %arg1[%c18, %c0_71, %c0_72] : memref<33x2x128xf32, #tpu.memory_space<vmem>>, vector<1x2x128xf32>
    %181 = vector.shape_cast %180 : vector<1x2x128xf32> to vector<2x128xf32>
    %182 = vector.extract_strided_slice %181 {offsets = [0, 0], sizes = [2, 32], strides = [1, 1]} : vector<2x128xf32> to vector<2x32xf32>
    %c19 = arith.constant 19 : index
    %c0_73 = arith.constant 0 : index
    %c0_74 = arith.constant 0 : index
    %183 = vector.load %arg1[%c19, %c0_73, %c0_74] : memref<33x2x128xf32, #tpu.memory_space<vmem>>, vector<1x2x128xf32>
    %184 = vector.shape_cast %183 : vector<1x2x128xf32> to vector<2x128xf32>
    %185 = vector.extract_strided_slice %184 {offsets = [0, 0], sizes = [2, 32], strides = [1, 1]} : vector<2x128xf32> to vector<2x32xf32>
    %c20 = arith.constant 20 : index
    %c0_75 = arith.constant 0 : index
    %c0_76 = arith.constant 0 : index
    %186 = vector.load %arg1[%c20, %c0_75, %c0_76] : memref<33x2x128xf32, #tpu.memory_space<vmem>>, vector<1x2x128xf32>
    %187 = vector.shape_cast %186 : vector<1x2x128xf32> to vector<2x128xf32>
    %188 = vector.extract_strided_slice %187 {offsets = [0, 0], sizes = [2, 32], strides = [1, 1]} : vector<2x128xf32> to vector<2x32xf32>
    %cst_77 = arith.constant dense<0.000000e+00> : vector<2x32xf32>
    %189 = tpu.matmul %174, %15, %cst_77 {dimension_numbers = #tpu.dot_dimension_numbers<[1], [0], [0], [1], [0, 0, 1, 1], [], []>} : vector<2x32xf32>, vector<32x32xf32>, vector<2x32xf32> -> vector<2x32xf32>
    %cst_78 = arith.constant dense<0.000000e+00> : vector<2x32xf32>
    %190 = tpu.matmul %174, %16, %cst_78 {dimension_numbers = #tpu.dot_dimension_numbers<[1], [0], [0], [1], [0, 0, 1, 1], [], []>} : vector<2x32xf32>, vector<32x32xf32>, vector<2x32xf32> -> vector<2x32xf32>
    %cst_79 = arith.constant dense<0.000000e+00> : vector<2x32xf32>
    %191 = tpu.matmul %174, %17, %cst_79 {dimension_numbers = #tpu.dot_dimension_numbers<[1], [0], [0], [1], [0, 0, 1, 1], [], []>} : vector<2x32xf32>, vector<32x32xf32>, vector<2x32xf32> -> vector<2x32xf32>
    %192 = arith.addf %179, %189 : vector<2x32xf32>
    %193 = arith.negf %192 : vector<2x32xf32>
    %194 = math.exp %193 : vector<2x32xf32>
    %cst_80 = arith.constant 1.000000e+00 : f32
    %195 = vector.broadcast %cst_80 : f32 to vector<2x32xf32>
    %196 = arith.addf %195, %194 : vector<2x32xf32>
    %197 = arith.divf %195, %196 : vector<2x32xf32>
    %198 = arith.addf %182, %190 : vector<2x32xf32>
    %199 = arith.negf %198 : vector<2x32xf32>
    %200 = math.exp %199 : vector<2x32xf32>
    %cst_81 = arith.constant 1.000000e+00 : f32
    %201 = vector.broadcast %cst_81 : f32 to vector<2x32xf32>
    %202 = arith.addf %201, %200 : vector<2x32xf32>
    %203 = arith.divf %201, %202 : vector<2x32xf32>
    %204 = vector.broadcast %18 : vector<1x32xf32> to vector<2x32xf32>
    %205 = arith.addf %191, %204 : vector<2x32xf32>
    %206 = arith.mulf %197, %205 : vector<2x32xf32>
    %207 = arith.addf %185, %206 : vector<2x32xf32>
    %208 = math.tanh %207 : vector<2x32xf32>
    %cst_82 = arith.constant 1.000000e+00 : f32
    %209 = vector.broadcast %cst_82 : f32 to vector<2x32xf32>
    %210 = arith.subf %209, %203 : vector<2x32xf32>
    %211 = arith.mulf %210, %208 : vector<2x32xf32>
    %212 = arith.mulf %203, %174 : vector<2x32xf32>
    %213 = arith.addf %211, %212 : vector<2x32xf32>
    %214 = arith.mulf %188, %213 : vector<2x32xf32>
    %215 = arith.addf %176, %214 : vector<2x32xf32>
    %c21 = arith.constant 21 : index
    %c0_83 = arith.constant 0 : index
    %c0_84 = arith.constant 0 : index
    %216 = vector.load %arg1[%c21, %c0_83, %c0_84] : memref<33x2x128xf32, #tpu.memory_space<vmem>>, vector<1x2x128xf32>
    %217 = vector.shape_cast %216 : vector<1x2x128xf32> to vector<2x128xf32>
    %218 = vector.extract_strided_slice %217 {offsets = [0, 0], sizes = [2, 32], strides = [1, 1]} : vector<2x128xf32> to vector<2x32xf32>
    %c22 = arith.constant 22 : index
    %c0_85 = arith.constant 0 : index
    %c0_86 = arith.constant 0 : index
    %219 = vector.load %arg1[%c22, %c0_85, %c0_86] : memref<33x2x128xf32, #tpu.memory_space<vmem>>, vector<1x2x128xf32>
    %220 = vector.shape_cast %219 : vector<1x2x128xf32> to vector<2x128xf32>
    %221 = vector.extract_strided_slice %220 {offsets = [0, 0], sizes = [2, 32], strides = [1, 1]} : vector<2x128xf32> to vector<2x32xf32>
    %c23 = arith.constant 23 : index
    %c0_87 = arith.constant 0 : index
    %c0_88 = arith.constant 0 : index
    %222 = vector.load %arg1[%c23, %c0_87, %c0_88] : memref<33x2x128xf32, #tpu.memory_space<vmem>>, vector<1x2x128xf32>
    %223 = vector.shape_cast %222 : vector<1x2x128xf32> to vector<2x128xf32>
    %224 = vector.extract_strided_slice %223 {offsets = [0, 0], sizes = [2, 32], strides = [1, 1]} : vector<2x128xf32> to vector<2x32xf32>
    %c24 = arith.constant 24 : index
    %c0_89 = arith.constant 0 : index
    %c0_90 = arith.constant 0 : index
    %225 = vector.load %arg1[%c24, %c0_89, %c0_90] : memref<33x2x128xf32, #tpu.memory_space<vmem>>, vector<1x2x128xf32>
    %226 = vector.shape_cast %225 : vector<1x2x128xf32> to vector<2x128xf32>
    %227 = vector.extract_strided_slice %226 {offsets = [0, 0], sizes = [2, 32], strides = [1, 1]} : vector<2x128xf32> to vector<2x32xf32>
    %cst_91 = arith.constant dense<0.000000e+00> : vector<2x32xf32>
    %228 = tpu.matmul %213, %15, %cst_91 {dimension_numbers = #tpu.dot_dimension_numbers<[1], [0], [0], [1], [0, 0, 1, 1], [], []>} : vector<2x32xf32>, vector<32x32xf32>, vector<2x32xf32> -> vector<2x32xf32>
    %cst_92 = arith.constant dense<0.000000e+00> : vector<2x32xf32>
    %229 = tpu.matmul %213, %16, %cst_92 {dimension_numbers = #tpu.dot_dimension_numbers<[1], [0], [0], [1], [0, 0, 1, 1], [], []>} : vector<2x32xf32>, vector<32x32xf32>, vector<2x32xf32> -> vector<2x32xf32>
    %cst_93 = arith.constant dense<0.000000e+00> : vector<2x32xf32>
    %230 = tpu.matmul %213, %17, %cst_93 {dimension_numbers = #tpu.dot_dimension_numbers<[1], [0], [0], [1], [0, 0, 1, 1], [], []>} : vector<2x32xf32>, vector<32x32xf32>, vector<2x32xf32> -> vector<2x32xf32>
    %231 = arith.addf %218, %228 : vector<2x32xf32>
    %232 = arith.negf %231 : vector<2x32xf32>
    %233 = math.exp %232 : vector<2x32xf32>
    %cst_94 = arith.constant 1.000000e+00 : f32
    %234 = vector.broadcast %cst_94 : f32 to vector<2x32xf32>
    %235 = arith.addf %234, %233 : vector<2x32xf32>
    %236 = arith.divf %234, %235 : vector<2x32xf32>
    %237 = arith.addf %221, %229 : vector<2x32xf32>
    %238 = arith.negf %237 : vector<2x32xf32>
    %239 = math.exp %238 : vector<2x32xf32>
    %cst_95 = arith.constant 1.000000e+00 : f32
    %240 = vector.broadcast %cst_95 : f32 to vector<2x32xf32>
    %241 = arith.addf %240, %239 : vector<2x32xf32>
    %242 = arith.divf %240, %241 : vector<2x32xf32>
    %243 = vector.broadcast %18 : vector<1x32xf32> to vector<2x32xf32>
    %244 = arith.addf %230, %243 : vector<2x32xf32>
    %245 = arith.mulf %236, %244 : vector<2x32xf32>
    %246 = arith.addf %224, %245 : vector<2x32xf32>
    %247 = math.tanh %246 : vector<2x32xf32>
    %cst_96 = arith.constant 1.000000e+00 : f32
    %248 = vector.broadcast %cst_96 : f32 to vector<2x32xf32>
    %249 = arith.subf %248, %242 : vector<2x32xf32>
    %250 = arith.mulf %249, %247 : vector<2x32xf32>
    %251 = arith.mulf %242, %213 : vector<2x32xf32>
    %252 = arith.addf %250, %251 : vector<2x32xf32>
    %253 = arith.mulf %227, %252 : vector<2x32xf32>
    %254 = arith.addf %215, %253 : vector<2x32xf32>
    %c25 = arith.constant 25 : index
    %c0_97 = arith.constant 0 : index
    %c0_98 = arith.constant 0 : index
    %255 = vector.load %arg1[%c25, %c0_97, %c0_98] : memref<33x2x128xf32, #tpu.memory_space<vmem>>, vector<1x2x128xf32>
    %256 = vector.shape_cast %255 : vector<1x2x128xf32> to vector<2x128xf32>
    %257 = vector.extract_strided_slice %256 {offsets = [0, 0], sizes = [2, 32], strides = [1, 1]} : vector<2x128xf32> to vector<2x32xf32>
    %c26 = arith.constant 26 : index
    %c0_99 = arith.constant 0 : index
    %c0_100 = arith.constant 0 : index
    %258 = vector.load %arg1[%c26, %c0_99, %c0_100] : memref<33x2x128xf32, #tpu.memory_space<vmem>>, vector<1x2x128xf32>
    %259 = vector.shape_cast %258 : vector<1x2x128xf32> to vector<2x128xf32>
    %260 = vector.extract_strided_slice %259 {offsets = [0, 0], sizes = [2, 32], strides = [1, 1]} : vector<2x128xf32> to vector<2x32xf32>
    %c27 = arith.constant 27 : index
    %c0_101 = arith.constant 0 : index
    %c0_102 = arith.constant 0 : index
    %261 = vector.load %arg1[%c27, %c0_101, %c0_102] : memref<33x2x128xf32, #tpu.memory_space<vmem>>, vector<1x2x128xf32>
    %262 = vector.shape_cast %261 : vector<1x2x128xf32> to vector<2x128xf32>
    %263 = vector.extract_strided_slice %262 {offsets = [0, 0], sizes = [2, 32], strides = [1, 1]} : vector<2x128xf32> to vector<2x32xf32>
    %c28 = arith.constant 28 : index
    %c0_103 = arith.constant 0 : index
    %c0_104 = arith.constant 0 : index
    %264 = vector.load %arg1[%c28, %c0_103, %c0_104] : memref<33x2x128xf32, #tpu.memory_space<vmem>>, vector<1x2x128xf32>
    %265 = vector.shape_cast %264 : vector<1x2x128xf32> to vector<2x128xf32>
    %266 = vector.extract_strided_slice %265 {offsets = [0, 0], sizes = [2, 32], strides = [1, 1]} : vector<2x128xf32> to vector<2x32xf32>
    %cst_105 = arith.constant dense<0.000000e+00> : vector<2x32xf32>
    %267 = tpu.matmul %252, %15, %cst_105 {dimension_numbers = #tpu.dot_dimension_numbers<[1], [0], [0], [1], [0, 0, 1, 1], [], []>} : vector<2x32xf32>, vector<32x32xf32>, vector<2x32xf32> -> vector<2x32xf32>
    %cst_106 = arith.constant dense<0.000000e+00> : vector<2x32xf32>
    %268 = tpu.matmul %252, %16, %cst_106 {dimension_numbers = #tpu.dot_dimension_numbers<[1], [0], [0], [1], [0, 0, 1, 1], [], []>} : vector<2x32xf32>, vector<32x32xf32>, vector<2x32xf32> -> vector<2x32xf32>
    %cst_107 = arith.constant dense<0.000000e+00> : vector<2x32xf32>
    %269 = tpu.matmul %252, %17, %cst_107 {dimension_numbers = #tpu.dot_dimension_numbers<[1], [0], [0], [1], [0, 0, 1, 1], [], []>} : vector<2x32xf32>, vector<32x32xf32>, vector<2x32xf32> -> vector<2x32xf32>
    %270 = arith.addf %257, %267 : vector<2x32xf32>
    %271 = arith.negf %270 : vector<2x32xf32>
    %272 = math.exp %271 : vector<2x32xf32>
    %cst_108 = arith.constant 1.000000e+00 : f32
    %273 = vector.broadcast %cst_108 : f32 to vector<2x32xf32>
    %274 = arith.addf %273, %272 : vector<2x32xf32>
    %275 = arith.divf %273, %274 : vector<2x32xf32>
    %276 = arith.addf %260, %268 : vector<2x32xf32>
    %277 = arith.negf %276 : vector<2x32xf32>
    %278 = math.exp %277 : vector<2x32xf32>
    %cst_109 = arith.constant 1.000000e+00 : f32
    %279 = vector.broadcast %cst_109 : f32 to vector<2x32xf32>
    %280 = arith.addf %279, %278 : vector<2x32xf32>
    %281 = arith.divf %279, %280 : vector<2x32xf32>
    %282 = vector.broadcast %18 : vector<1x32xf32> to vector<2x32xf32>
    %283 = arith.addf %269, %282 : vector<2x32xf32>
    %284 = arith.mulf %275, %283 : vector<2x32xf32>
    %285 = arith.addf %263, %284 : vector<2x32xf32>
    %286 = math.tanh %285 : vector<2x32xf32>
    %cst_110 = arith.constant 1.000000e+00 : f32
    %287 = vector.broadcast %cst_110 : f32 to vector<2x32xf32>
    %288 = arith.subf %287, %281 : vector<2x32xf32>
    %289 = arith.mulf %288, %286 : vector<2x32xf32>
    %290 = arith.mulf %281, %252 : vector<2x32xf32>
    %291 = arith.addf %289, %290 : vector<2x32xf32>
    %292 = arith.mulf %266, %291 : vector<2x32xf32>
    %293 = arith.addf %254, %292 : vector<2x32xf32>
    %c29 = arith.constant 29 : index
    %c0_111 = arith.constant 0 : index
    %c0_112 = arith.constant 0 : index
    %294 = vector.load %arg1[%c29, %c0_111, %c0_112] : memref<33x2x128xf32, #tpu.memory_space<vmem>>, vector<1x2x128xf32>
    %295 = vector.shape_cast %294 : vector<1x2x128xf32> to vector<2x128xf32>
    %296 = vector.extract_strided_slice %295 {offsets = [0, 0], sizes = [2, 32], strides = [1, 1]} : vector<2x128xf32> to vector<2x32xf32>
    %c30 = arith.constant 30 : index
    %c0_113 = arith.constant 0 : index
    %c0_114 = arith.constant 0 : index
    %297 = vector.load %arg1[%c30, %c0_113, %c0_114] : memref<33x2x128xf32, #tpu.memory_space<vmem>>, vector<1x2x128xf32>
    %298 = vector.shape_cast %297 : vector<1x2x128xf32> to vector<2x128xf32>
    %299 = vector.extract_strided_slice %298 {offsets = [0, 0], sizes = [2, 32], strides = [1, 1]} : vector<2x128xf32> to vector<2x32xf32>
    %c31 = arith.constant 31 : index
    %c0_115 = arith.constant 0 : index
    %c0_116 = arith.constant 0 : index
    %300 = vector.load %arg1[%c31, %c0_115, %c0_116] : memref<33x2x128xf32, #tpu.memory_space<vmem>>, vector<1x2x128xf32>
    %301 = vector.shape_cast %300 : vector<1x2x128xf32> to vector<2x128xf32>
    %302 = vector.extract_strided_slice %301 {offsets = [0, 0], sizes = [2, 32], strides = [1, 1]} : vector<2x128xf32> to vector<2x32xf32>
    %c32 = arith.constant 32 : index
    %c0_117 = arith.constant 0 : index
    %c0_118 = arith.constant 0 : index
    %303 = vector.load %arg1[%c32, %c0_117, %c0_118] : memref<33x2x128xf32, #tpu.memory_space<vmem>>, vector<1x2x128xf32>
    %304 = vector.shape_cast %303 : vector<1x2x128xf32> to vector<2x128xf32>
    %305 = vector.extract_strided_slice %304 {offsets = [0, 0], sizes = [2, 32], strides = [1, 1]} : vector<2x128xf32> to vector<2x32xf32>
    %cst_119 = arith.constant dense<0.000000e+00> : vector<2x32xf32>
    %306 = tpu.matmul %291, %15, %cst_119 {dimension_numbers = #tpu.dot_dimension_numbers<[1], [0], [0], [1], [0, 0, 1, 1], [], []>} : vector<2x32xf32>, vector<32x32xf32>, vector<2x32xf32> -> vector<2x32xf32>
    %cst_120 = arith.constant dense<0.000000e+00> : vector<2x32xf32>
    %307 = tpu.matmul %291, %16, %cst_120 {dimension_numbers = #tpu.dot_dimension_numbers<[1], [0], [0], [1], [0, 0, 1, 1], [], []>} : vector<2x32xf32>, vector<32x32xf32>, vector<2x32xf32> -> vector<2x32xf32>
    %cst_121 = arith.constant dense<0.000000e+00> : vector<2x32xf32>
    %308 = tpu.matmul %291, %17, %cst_121 {dimension_numbers = #tpu.dot_dimension_numbers<[1], [0], [0], [1], [0, 0, 1, 1], [], []>} : vector<2x32xf32>, vector<32x32xf32>, vector<2x32xf32> -> vector<2x32xf32>
    %309 = arith.addf %296, %306 : vector<2x32xf32>
    %310 = arith.negf %309 : vector<2x32xf32>
    %311 = math.exp %310 : vector<2x32xf32>
    %cst_122 = arith.constant 1.000000e+00 : f32
    %312 = vector.broadcast %cst_122 : f32 to vector<2x32xf32>
    %313 = arith.addf %312, %311 : vector<2x32xf32>
    %314 = arith.divf %312, %313 : vector<2x32xf32>
    %315 = arith.addf %299, %307 : vector<2x32xf32>
    %316 = arith.negf %315 : vector<2x32xf32>
    %317 = math.exp %316 : vector<2x32xf32>
    %cst_123 = arith.constant 1.000000e+00 : f32
    %318 = vector.broadcast %cst_123 : f32 to vector<2x32xf32>
    %319 = arith.addf %318, %317 : vector<2x32xf32>
    %320 = arith.divf %318, %319 : vector<2x32xf32>
    %321 = vector.broadcast %18 : vector<1x32xf32> to vector<2x32xf32>
    %322 = arith.addf %308, %321 : vector<2x32xf32>
    %323 = arith.mulf %314, %322 : vector<2x32xf32>
    %324 = arith.addf %302, %323 : vector<2x32xf32>
    %325 = math.tanh %324 : vector<2x32xf32>
    %cst_124 = arith.constant 1.000000e+00 : f32
    %326 = vector.broadcast %cst_124 : f32 to vector<2x32xf32>
    %327 = arith.subf %326, %320 : vector<2x32xf32>
    %328 = arith.mulf %327, %325 : vector<2x32xf32>
    %329 = arith.mulf %320, %291 : vector<2x32xf32>
    %330 = arith.addf %328, %329 : vector<2x32xf32>
    %331 = arith.mulf %305, %330 : vector<2x32xf32>
    %332 = arith.addf %293, %331 : vector<2x32xf32>
    %c240 = arith.constant 240 : index
    %c0_125 = arith.constant 0 : index
    %333 = vector.load %arg0[%c240, %c0_125] : memref<320x128xf32, #tpu.memory_space<vmem>>, vector<32x32xf32>
    %c272 = arith.constant 272 : index
    %c0_126 = arith.constant 0 : index
    %334 = vector.load %arg0[%c272, %c0_126] : memref<320x128xf32, #tpu.memory_space<vmem>>, vector<1x32xf32>
    %cst_127 = arith.constant dense<0.000000e+00> : vector<2x32xf32>
    %335 = tpu.matmul %332, %333, %cst_127 {dimension_numbers = #tpu.dot_dimension_numbers<[1], [0], [0], [1], [0, 0, 1, 1], [], []>} : vector<2x32xf32>, vector<32x32xf32>, vector<2x32xf32> -> vector<2x32xf32>
    %336 = vector.broadcast %334 : vector<1x32xf32> to vector<2x32xf32>
    %337 = arith.addf %335, %336 : vector<2x32xf32>
    %338 = arith.mulf %9, %337 : vector<2x32xf32>
    %339 = arith.addf %338, %13 : vector<2x32xf32>
    %cst_128 = arith.constant 0.000000e+00 : f32
    %340 = vector.broadcast %cst_128 : f32 to vector<2x32xf32>
    %341 = arith.maximumf %339, %340 : vector<2x32xf32>
    %342 = arith.addf %341, %332 : vector<2x32xf32>
    %cst_129 = arith.constant dense<0.000000e+00> : vector<2x32xf32>
    %343 = tpu.matmul %342, %333, %cst_129 {dimension_numbers = #tpu.dot_dimension_numbers<[1], [0], [0], [1], [0, 0, 1, 1], [], []>} : vector<2x32xf32>, vector<32x32xf32>, vector<2x32xf32> -> vector<2x32xf32>
    %344 = vector.broadcast %334 : vector<1x32xf32> to vector<2x32xf32>
    %345 = arith.addf %343, %344 : vector<2x32xf32>
    %346 = arith.mulf %12, %345 : vector<2x32xf32>
    %347 = arith.addf %346, %14 : vector<2x32xf32>
    %cst_130 = arith.constant 0.000000e+00 : f32
    %348 = vector.broadcast %cst_130 : f32 to vector<2x32xf32>
    %349 = arith.maximumf %347, %348 : vector<2x32xf32>
    %350 = arith.addf %349, %342 : vector<2x32xf32>
    %c280 = arith.constant 280 : index
    %c0_131 = arith.constant 0 : index
    %351 = vector.load %arg0[%c280, %c0_131] : memref<320x128xf32, #tpu.memory_space<vmem>>, vector<32x128xf32>
    %cst_132 = arith.constant dense<0.000000e+00> : vector<2x128xf32>
    %352 = tpu.matmul %350, %351, %cst_132 {dimension_numbers = #tpu.dot_dimension_numbers<[1], [0], [0], [1], [0, 0, 1, 1], [], []>} : vector<2x32xf32>, vector<32x128xf32>, vector<2x128xf32> -> vector<2x128xf32>
    %c312 = arith.constant 312 : index
    %c0_133 = arith.constant 0 : index
    %353 = vector.load %arg0[%c312, %c0_133] : memref<320x128xf32, #tpu.memory_space<vmem>>, vector<1x128xf32>
    %354 = vector.broadcast %353 : vector<1x128xf32> to vector<2x128xf32>
    %355 = arith.addf %352, %354 : vector<2x128xf32>
    %c0_134 = arith.constant 0 : index
    %c0_135 = arith.constant 0 : index
    %356 = vector.load %arg2[%c0_134, %c0_135] : memref<2x128xf32, #tpu.memory_space<vmem>>, vector<2x128xf32>
    tpu.vector_store %arg2[%c0_134, %c0_135], %355 {strides = array<i32>} : memref<2x128xf32, #tpu.memory_space<vmem>>, vector<2x128xf32>,
    return
  }
}

</mosaic_0001>

<llo_original>
// kernel: mem_net_forward.1
$region0: #{mem_net_forward.1}
  #allocation0 [shape = 'u32[]', space=smem, size = 0x4, offset = 0x4, fixed_abs, tag = 'smem constant byte address 0x4 - core index']
  #allocation1 [shape = 'u32[144,128]{1,0:T(1,128)}', space=vmem, size = 0x12000, scoped, tag = 'internal scratch']
  %s0 = inlined_call_operand.vmem [shape: f32[320,128], index: 0, kind: input, shape index: {}]
  %s1 = inlined_call_operand.vmem [shape: f32[33,2,128], index: 1, kind: input, shape index: {}]
  %s2 = inlined_call_operand.hbm [shape: f32[2,128], index: 2, kind: output, shape index: {}]
  %s3 = sld [smem:[#allocation0]]
  $region18: #{mem_net_forward.1} parent=0
    _
  %s5 = ssub.s32 1, %s3
  %s6 = scalar_select 0, %s5, %s3
  $region1: #{mem_net_forward.1} parent=0
    #allocation2 [shape = 'u8[1024]{0}', space=vmem, size = 0x400, scoped, tag = 'output window, operand 0, single buffered']
    #allocation3 [shape = 's32[1]{0}', space=sflag, size = 0x4, scoped, tag = 'scoped memory for mem_net_forward.1']
    %7 = vsyncpa [#allocation3], 0
    // Predicated region
    $region2: #{mem_net_forward.1} parent=1 // pred_check
      _
    $region3: #{mem_net_forward.1} parent=1 // pred_check_branch
      %9 = sbr.rel (0) target = $region5
    $region4: #{mem_net_forward.1} parent=1 // pred_region
      _
    $region5: #{mem_net_forward.1} parent=1 // pred_fallthru
      _
    // Predicated region
    $region6: #{mem_net_forward.1} parent=1 // pred_check
      _
    $region7: #{mem_net_forward.1} parent=1 // pred_check_branch
      %11 = sbr.rel (0) target = $region9
    $region8: #{mem_net_forward.1} parent=1 // pred_region
      _
    $region9: #{mem_net_forward.1} parent=1 // pred_fallthru
      _
    %v12 = vld [vmem:[%s1] sm:$0x3]
    %v13 = vld [vmem:[%s0] sm:$0xff]
    %v14 = vld [vmem:[%s0 + $0x8] sm:$0xff]
    %v15 = vld [vmem:[%s0 + $0x10] sm:$0xff]
    %v16 = vld [vmem:[%s0 + $0x18] sm:$0xff]
    %v17 = vld [vmem:[%s0 + $0x20] sm:$0xff]
    %v18 = vld [vmem:[%s0 + $0x28] sm:$0xff]
    %v19 = vld [vmem:[%s0 + $0x30] sm:$0xff]
    %v20 = vld [vmem:[%s0 + $0x38] sm:$0xff]
    %v21 = vld [vmem:[%s0 + $0x40] sm:$0xff]
    %v22 = vld [vmem:[%s0 + $0x48] sm:$0xff]
    %v23 = vld [vmem:[%s0 + $0x50] sm:$0xff]
    %v24 = vld [vmem:[%s0 + $0x58] sm:$0xff]
    %v25 = vld [vmem:[%s0 + $0x60] sm:$0xff]
    %v26 = vld [vmem:[%s0 + $0x68] sm:$0xff]
    %v27 = vld [vmem:[%s0 + $0x70] sm:$0xff]
    %v28 = vld [vmem:[%s0 + $0x78] sm:$0xff]
    %v29 = vld [vmem:[%s0 + $0x80] sm:$0x1]
    %v30 = vlaneseq
    %v31 = vshrl.u32 %v30, 7
    %v32 = vsub.s32 0, %v31
    %v33 = vrot.slane %v29, %v32
    %34 = vmatprep.subr.mxu0 0.0
    %35 = vmatpush1.msra.mxu0 %v13
    %36 = vmatprep.subr.mxu0 0.0
    %37 = vmatpush1.msra.mxu0 %v14
    %38 = vmatprep.subr.mxu0 0.0
    %39 = vmatpush1.msra.mxu0 %v15
    %40 = vmatprep.subr.mxu0 0.0
    %41 = vmatpush1.msra.mxu0 %v16
    %42 = vmatprep.subr.mxu0 0.0
    %43 = vmatpush1.msra.mxu0 %v17
    %44 = vmatprep.subr.mxu0 0.0
    %45 = vmatpush1.msra.mxu0 %v18
    %46 = vmatprep.subr.mxu0 0.0
    %47 = vmatpush1.msra.mxu0 %v19
    %48 = vmatprep.subr.mxu0 0.0
    %49 = vmatpush1.msra.mxu0 %v20
    %50 = vmatprep.subr.mxu0 0.0
    %51 = vmatpush1.msra.mxu0 %v21
    %52 = vmatprep.subr.mxu0 0.0
    %53 = vmatpush1.msra.mxu0 %v22
    %54 = vmatprep.subr.mxu0 0.0
    %55 = vmatpush1.msra.mxu0 %v23
    %56 = vmatprep.subr.mxu0 0.0
    %57 = vmatpush1.msra.mxu0 %v24
    %58 = vmatprep.subr.mxu0 0.0
    %59 = vmatpush1.msra.mxu0 %v25
    %60 = vmatprep.subr.mxu0 0.0
    %61 = vmatpush1.msra.mxu0 %v26
    %62 = vmatprep.subr.mxu0 0.0
    %63 = vmatpush1.msra.mxu0 %v27
    %64 = vmatprep.subr.mxu0 0.0
    %65 = vmatpush1.msra.mxu0 %v28
    %66 = vmatprep.subr.mxu0 0.0
    %67 = vmatpush1.msra.mxu0 0.0
    %68 = vmatprep.subr.mxu0 0.0
    %69 = vmatpush1.msra.mxu0 0.0
    %70 = vmatprep.subr.mxu0 0.0
    %71 = vmatpush1.msra.mxu0 0.0
    %72 = vmatprep.subr.mxu0 0.0
    %73 = vmatpush1.msra.mxu0 0.0
    %74 = vmatprep.subr.mxu0 0.0
    %75 = vmatpush1.msra.mxu0 0.0
    %76 = vmatprep.subr.mxu0 0.0
    %77 = vmatpush1.msra.mxu0 0.0
    %78 = vmatprep.subr.mxu0 0.0
    %79 = vmatpush1.msra.mxu0 0.0
    %80 = vmatprep.subr.mxu0 0.0
    %81 = vmatpush1.msra.mxu0 0.0
    %82 = vmatprep.subr.mxu0 0.0
    %83 = vmatpush1.msra.mxu0 0.0
    %84 = vmatprep.subr.mxu0 0.0
    %85 = vmatpush1.msra.mxu0 0.0
    %86 = vmatprep.subr.mxu0 0.0
    %87 = vmatpush1.msra.mxu0 0.0
    %88 = vmatprep.subr.mxu0 0.0
    %89 = vmatpush1.msra.mxu0 0.0
    %90 = vmatprep.subr.mxu0 0.0
    %91 = vmatpush1.msra.mxu0 0.0
    %92 = vmatprep.subr.mxu0 0.0
    %93 = vmatpush1.msra.mxu0 0.0
    %94 = vmatprep.subr.mxu0 0.0
    %95 = vmatpush1.msra.mxu0 0.0
    %96 = vmatprep.subr.mxu0 0.0
    %97 = vmatpush1.msra.mxu0 0.0
    %98 = vmatprep.mubr.f32.mxu0 0.0
    %99 = vmatmul.mubr.f32.gmra.mrb[0].mxu0 %v12
    %v100 = vpop.f32.mrb[0].mxu0
    %v101 = vadd.f32 %v33, %v100
    %v102 = vpop.f32.mrb[0].mxu0
    %103 = vdwg.mxu0
    %v104 = vadd.f32 %v101, 1.0
    %v105 = vld [vmem:[%s0 + $0x88] sm:$0xff]
    %v106 = vld [vmem:[%s0 + $0x90] sm:$0xff]
    %v107 = vld [vmem:[%s0 + $0x98] sm:$0xff]
    %v108 = vld [vmem:[%s0 + $0xa0] sm:$0xff]
    %v109 = vld [vmem:[%s0 + $0xa8] sm:$0xff]
    %v110 = vld [vmem:[%s0 + $0xb0] sm:$0xff]
    %v111 = vld [vmem:[%s0 + $0xb8] sm:$0xff]
    %v112 = vld [vmem:[%s0 + $0xc0] sm:$0xff]
    %v113 = vld [vmem:[%s0 + $0xc8] sm:$0xff]
    %v114 = vld [vmem:[%s0 + $0xd0] sm:$0xff]
    %v115 = vld [vmem:[%s0 + $0xd8] sm:$0xff]
    %v116 = vld [vmem:[%s0 + $0xe0] sm:$0xff]
    %v117 = vld [vmem:[%s0 + $0xe8] sm:$0x1]
    %s118 = scalar_lea.vmem %s1, 2
    %v119 = vld [vmem:[%s118] sm:$0x3]
    %s120 = scalar_lea.vmem %s1, 4
    %v121 = vld [vmem:[%s120] sm:$0x3]
    %s122 = scalar_lea.vmem %s1, 6
    %v123 = vld [vmem:[%s122] sm:$0x3]
    %s124 = scalar_lea.vmem %s1, 8
    %v125 = vld [vmem:[%s124] sm:$0x3]
    %vm126 = vcmask 261120
    %v128 = vsel %vm126, 0.0, 0
    %130 = vmatprep.subr.mxu0 0.0
    %131 = vmatpush1.msra.mxu0 %v105
    %132 = vmatprep.subr.mxu0 0.0
    %133 = vmatpush1.msra.mxu0 %v106
    %134 = vmatprep.subr.mxu0 0.0
    %135 = vmatpush1.msra.mxu0 %v107
    %136 = vmatprep.subr.mxu0 0.0
    %137 = vmatpush1.msra.mxu0 %v108
    %138 = vmatprep.subr.mxu0 0.0
    %139 = vmatpush1.msra.mxu0 0.0
    %140 = vmatprep.subr.mxu0 0.0
    %141 = vmatpush1.msra.mxu0 0.0
    %142 = vmatprep.subr.mxu0 0.0
    %143 = vmatpush1.msra.mxu0 0.0
    %144 = vmatprep.subr.mxu0 0.0
    %145 = vmatpush1.msra.mxu0 0.0
    %146 = vmatprep.subr.mxu0 0.0
    %147 = vmatpush1.msra.mxu0 0.0
    %148 = vmatprep.subr.mxu0 0.0
    %149 = vmatpush1.msra.mxu0 0.0
    %150 = vmatprep.subr.mxu0 0.0
    %151 = vmatpush1.msra.mxu0 0.0
    %152 = vmatprep.subr.mxu0 0.0
    %153 = vmatpush1.msra.mxu0 0.0
    %154 = vmatprep.subr.mxu0 0.0
    %155 = vmatpush1.msra.mxu0 0.0
    %156 = vmatprep.subr.mxu0 0.0
    %157 = vmatpush1.msra.mxu0 0.0
    %158 = vmatprep.subr.mxu0 0.0
    %159 = vmatpush1.msra.mxu0 0.0
    %160 = vmatprep.subr.mxu0 0.0
    %161 = vmatpush1.msra.mxu0 0.0
    %162 = vmatprep.subr.mxu0 0.0
    %163 = vmatpush1.msra.mxu0 0.0
    %164 = vmatprep.subr.mxu0 0.0
    %165 = vmatpush1.msra.mxu0 0.0
    %166 = vmatprep.subr.mxu0 0.0
    %167 = vmatpush1.msra.mxu0 0.0
    %168 = vmatprep.subr.mxu0 0.0
    %169 = vmatpush1.msra.mxu0 0.0
    %170 = vmatprep.subr.mxu0 0.0
    %171 = vmatpush1.msra.mxu0 0.0
    %172 = vmatprep.subr.mxu0 0.0
    %173 = vmatpush1.msra.mxu0 0.0
    %174 = vmatprep.subr.mxu0 0.0
    %175 = vmatpush1.msra.mxu0 0.0
    %176 = vmatprep.subr.mxu0 0.0
    %177 = vmatpush1.msra.mxu0 0.0
    %178 = vmatprep.subr.mxu0 0.0
    %179 = vmatpush1.msra.mxu0 0.0
    %180 = vmatprep.subr.mxu0 0.0
    %181 = vmatpush1.msra.mxu0 0.0
    %182 = vmatprep.subr.mxu0 0.0
    %183 = vmatpush1.msra.mxu0 0.0
    %184 = vmatprep.subr.mxu0 0.0
    %185 = vmatpush1.msra.mxu0 0.0
    %186 = vmatprep.subr.mxu0 0.0
    %187 = vmatpush1.msra.mxu0 0.0
    %188 = vmatprep.subr.mxu0 0.0
    %189 = vmatpush1.msra.mxu0 0.0
    %190 = vmatprep.subr.mxu0 0.0
    %191 = vmatpush1.msra.mxu0 0.0
    %192 = vmatprep.subr.mxu0 0.0
    %193 = vmatpush1.msra.mxu0 0.0
    %194 = vmatprep.mubr.f32.mxu0 0.0
    %195 = vmatmul.mubr.f32.gmra.mrb[0].mxu0 %v128
    %v196 = vpop.f32.mrb[0].mxu0
    %v197 = vadd.f32 0.0, %v196
    %v198 = vpop.f32.mrb[0].mxu0
    %199 = vdwg.mxu0
    %200 = vmatprep.subr.mxu0 0.0
    %201 = vmatpush1.msra.mxu0 %v109
    %202 = vmatprep.subr.mxu0 0.0
    %203 = vmatpush1.msra.mxu0 %v110
    %204 = vmatprep.subr.mxu0 0.0
    %205 = vmatpush1.msra.mxu0 %v111
    %206 = vmatprep.subr.mxu0 0.0
    %207 = vmatpush1.msra.mxu0 %v112
    %208 = vmatprep.subr.mxu0 0.0
    %209 = vmatpush1.msra.mxu0 0.0
    %210 = vmatprep.subr.mxu0 0.0
    %211 = vmatpush1.msra.mxu0 0.0
    %212 = vmatprep.subr.mxu0 0.0
    %213 = vmatpush1.msra.mxu0 0.0
    %214 = vmatprep.subr.mxu0 0.0
    %215 = vmatpush1.msra.mxu0 0.0
    %216 = vmatprep.subr.mxu0 0.0
    %217 = vmatpush1.msra.mxu0 0.0
    %218 = vmatprep.subr.mxu0 0.0
    %219 = vmatpush1.msra.mxu0 0.0
    %220 = vmatprep.subr.mxu0 0.0
    %221 = vmatpush1.msra.mxu0 0.0
    %222 = vmatprep.subr.mxu0 0.0
    %223 = vmatpush1.msra.mxu0 0.0
    %224 = vmatprep.subr.mxu0 0.0
    %225 = vmatpush1.msra.mxu0 0.0
    %226 = vmatprep.subr.mxu0 0.0
    %227 = vmatpush1.msra.mxu0 0.0
    %228 = vmatprep.subr.mxu0 0.0
    %229 = vmatpush1.msra.mxu0 0.0
    %230 = vmatprep.subr.mxu0 0.0
    %231 = vmatpush1.msra.mxu0 0.0
    %232 = vmatprep.subr.mxu0 0.0
    %233 = vmatpush1.msra.mxu0 0.0
    %234 = vmatprep.subr.mxu0 0.0
    %235 = vmatpush1.msra.mxu0 0.0
    %236 = vmatprep.subr.mxu0 0.0
    %237 = vmatpush1.msra.mxu0 0.0
    %238 = vmatprep.subr.mxu0 0.0
    %239 = vmatpush1.msra.mxu0 0.0
    %240 = vmatprep.subr.mxu0 0.0
    %241 = vmatpush1.msra.mxu0 0.0
    %242 = vmatprep.subr.mxu0 0.0
    %243 = vmatpush1.msra.mxu0 0.0
    %244 = vmatprep.subr.mxu0 0.0
    %245 = vmatpush1.msra.mxu0 0.0
    %246 = vmatprep.subr.mxu0 0.0
    %247 = vmatpush1.msra.mxu0 0.0
    %248 = vmatprep.subr.mxu0 0.0
    %249 = vmatpush1.msra.mxu0 0.0
    %250 = vmatprep.subr.mxu0 0.0
    %251 = vmatpush1.msra.mxu0 0.0
    %252 = vmatprep.subr.mxu0 0.0
    %253 = vmatpush1.msra.mxu0 0.0
    %254 = vmatprep.subr.mxu0 0.0
    %255 = vmatpush1.msra.mxu0 0.0
    %256 = vmatprep.subr.mxu0 0.0
    %257 = vmatpush1.msra.mxu0 0.0
    %258 = vmatprep.subr.mxu0 0.0
    %259 = vmatpush1.msra.mxu0 0.0
    %260 = vmatprep.subr.mxu0 0.0
    %261 = vmatpush1.msra.mxu0 0.0
    %262 = vmatprep.subr.mxu0 0.0
    %263 = vmatpush1.msra.mxu0 0.0
    %264 = vmatprep.mubr.f32.mxu0 0.0
    %265 = vmatmul.mubr.f32.gmra.mrb[0].mxu0 %v128
    %v266 = vpop.f32.mrb[0].mxu0
    %v267 = vadd.f32 0.0, %v266
    %v268 = vpop.f32.mrb[0].mxu0
    %269 = vdwg.mxu0
    %v270 = vadd.f32 %v119, %v197
    %v271 = vxor.u32 %v270, 2147483648
    %v272 = vmul.f32 %v271, 1.442695
    %v273 = vpow.pop %v272
    %v274 = vadd.f32 %v273, 1.0
    %v275 = vrcp.pop %v274
    %v276 = vmul.f32 1.0, %v275
    %v277 = vadd.f32 %v121, %v267
    %v278 = vxor.u32 %v277, 2147483648
    %v279 = vmul.f32 %v278, 1.442695
    %v280 = vpow.pop %v279
    %v281 = vadd.f32 %v280, 1.0
    %v282 = vrcp.pop %v281
    %v283 = vmul.f32 1.0, %v282
    %v284 = vlaneseq
    %v285 = vshrl.u32 %v284, 7
    %v286 = vsub.s32 0, %v285
    %v287 = vrot.slane %v117, %v286
    %288 = vmatprep.subr.mxu0 0.0
    %289 = vmatpush1.msra.mxu0 %v113
    %290 = vmatprep.subr.mxu0 0.0
    %291 = vmatpush1.msra.mxu0 %v114
    %292 = vmatprep.subr.mxu0 0.0
    %293 = vmatpush1.msra.mxu0 %v115
    %294 = vmatprep.subr.mxu0 0.0
    %295 = vmatpush1.msra.mxu0 %v116
    %296 = vmatprep.subr.mxu0 0.0
    %297 = vmatpush1.msra.mxu0 0.0
    %298 = vmatprep.subr.mxu0 0.0
    %299 = vmatpush1.msra.mxu0 0.0
    %300 = vmatprep.subr.mxu0 0.0
    %301 = vmatpush1.msra.mxu0 0.0
    %302 = vmatprep.subr.mxu0 0.0
    %303 = vmatpush1.msra.mxu0 0.0
    %304 = vmatprep.subr.mxu0 0.0
    %305 = vmatpush1.msra.mxu0 0.0
    %306 = vmatprep.subr.mxu0 0.0
    %307 = vmatpush1.msra.mxu0 0.0
    %308 = vmatprep.subr.mxu0 0.0
    %309 = vmatpush1.msra.mxu0 0.0
    %310 = vmatprep.subr.mxu0 0.0
    %311 = vmatpush1.msra.mxu0 0.0
    %312 = vmatprep.subr.mxu0 0.0
    %313 = vmatpush1.msra.mxu0 0.0
    %314 = vmatprep.subr.mxu0 0.0
    %315 = vmatpush1.msra.mxu0 0.0
    %316 = vmatprep.subr.mxu0 0.0
    %317 = vmatpush1.msra.mxu0 0.0
    %318 = vmatprep.subr.mxu0 0.0
    %319 = vmatpush1.msra.mxu0 0.0
    %320 = vmatprep.subr.mxu0 0.0
    %321 = vmatpush1.msra.mxu0 0.0
    %322 = vmatprep.subr.mxu0 0.0
    %323 = vmatpush1.msra.mxu0 0.0
    %324 = vmatprep.subr.mxu0 0.0
    %325 = vmatpush1.msra.mxu0 0.0
    %326 = vmatprep.subr.mxu0 0.0
    %327 = vmatpush1.msra.mxu0 0.0
    %328 = vmatprep.subr.mxu0 0.0
    %329 = vmatpush1.msra.mxu0 0.0
    %330 = vmatprep.subr.mxu0 0.0
    %331 = vmatpush1.msra.mxu0 0.0
    %332 = vmatprep.subr.mxu0 0.0
    %333 = vmatpush1.msra.mxu0 0.0
    %334 = vmatprep.subr.mxu0 0.0
    %335 = vmatpush1.msra.mxu0 0.0
    %336 = vmatprep.subr.mxu0 0.0
    %337 = vmatpush1.msra.mxu0 0.0
    %338 = vmatprep.subr.mxu0 0.0
    %339 = vmatpush1.msra.mxu0 0.0
    %340 = vmatprep.subr.mxu0 0.0
    %341 = vmatpush1.msra.mxu0 0.0
    %342 = vmatprep.subr.mxu0 0.0
    %343 = vmatpush1.msra.mxu0 0.0
    %344 = vmatprep.subr.mxu0 0.0
    %345 = vmatpush1.msra.mxu0 0.0
    %346 = vmatprep.subr.mxu0 0.0
    %347 = vmatpush1.msra.mxu0 0.0
    %348 = vmatprep.subr.mxu0 0.0
    %349 = vmatpush1.msra.mxu0 0.0
    %350 = vmatprep.subr.mxu0 0.0
    %351 = vmatpush1.msra.mxu0 0.0
    %352 = vmatprep.mubr.f32.mxu0 0.0
    %353 = vmatmul.mubr.f32.gmra.mrb[0].mxu0 %v128
    %v354 = vpop.f32.mrb[0].mxu0
    %v355 = vadd.f32 %v287, %v354
    %v356 = vpop.f32.mrb[0].mxu0
    %357 = vdwg.mxu0
    %v358 = vmul.f32 %v276, %v355
    %v359 = vadd.f32 %v123, %v358
    %v360 = vtanh.pop %v359
    %v361 = vsub.f32 1.0, %v283
    %v362 = vmul.f32 %v361, %v360
    %v363 = vmul.f32 %v283, 0.0
    %v364 = vadd.f32 %v362, %v363
    %v365 = vmul.f32 %v125, %v364
    %v366 = vadd.f32 %v365, 0.0
    %s367 = scalar_lea.vmem %s1, 10
    %v368 = vld [vmem:[%s367] sm:$0x3]
    %s369 = scalar_lea.vmem %s1, 12
    %v370 = vld [vmem:[%s369] sm:$0x3]
    %s371 = scalar_lea.vmem %s1, 14
    %v372 = vld [vmem:[%s371] sm:$0x3]
    %s373 = scalar_lea.vmem %s1, 16
    %v374 = vld [vmem:[%s373] sm:$0x3]
    %v376 = vsel %vm126, %v364, 0
    %378 = vmatprep.subr.mxu0 0.0
    %379 = vmatpush1.msra.mxu0 %v105
    %380 = vmatprep.subr.mxu0 0.0
    %381 = vmatpush1.msra.mxu0 %v106
    %382 = vmatprep.subr.mxu0 0.0
    %383 = vmatpush1.msra.mxu0 %v107
    %384 = vmatprep.subr.mxu0 0.0
    %385 = vmatpush1.msra.mxu0 %v108
    %386 = vmatprep.subr.mxu0 0.0
    %387 = vmatpush1.msra.mxu0 0.0
    %388 = vmatprep.subr.mxu0 0.0
    %389 = vmatpush1.msra.mxu0 0.0
    %390 = vmatprep.subr.mxu0 0.0
    %391 = vmatpush1.msra.mxu0 0.0
    %392 = vmatprep.subr.mxu0 0.0
    %393 = vmatpush1.msra.mxu0 0.0
    %394 = vmatprep.subr.mxu0 0.0
    %395 = vmatpush1.msra.mxu0 0.0
    %396 = vmatprep.subr.mxu0 0.0
    %397 = vmatpush1.msra.mxu0 0.0
    %398 = vmatprep.subr.mxu0 0.0
    %399 = vmatpush1.msra.mxu0 0.0
    %400 = vmatprep.subr.mxu0 0.0
    %401 = vmatpush1.msra.mxu0 0.0
    %402 = vmatprep.subr.mxu0 0.0
    %403 = vmatpush1.msra.mxu0 0.0
    %404 = vmatprep.subr.mxu0 0.0
    %405 = vmatpush1.msra.mxu0 0.0
    %406 = vmatprep.subr.mxu0 0.0
    %407 = vmatpush1.msra.mxu0 0.0
    %408 = vmatprep.subr.mxu0 0.0
    %409 = vmatpush1.msra.mxu0 0.0
    %410 = vmatprep.subr.mxu0 0.0
    %411 = vmatpush1.msra.mxu0 0.0
    %412 = vmatprep.subr.mxu0 0.0
    %413 = vmatpush1.msra.mxu0 0.0
    %414 = vmatprep.subr.mxu0 0.0
    %415 = vmatpush1.msra.mxu0 0.0
    %416 = vmatprep.subr.mxu0 0.0
    %417 = vmatpush1.msra.mxu0 0.0
    %418 = vmatprep.subr.mxu0 0.0
    %419 = vmatpush1.msra.mxu0 0.0
    %420 = vmatprep.subr.mxu0 0.0
    %421 = vmatpush1.msra.mxu0 0.0
    %422 = vmatprep.subr.mxu0 0.0
    %423 = vmatpush1.msra.mxu0 0.0
    %424 = vmatprep.subr.mxu0 0.0
    %425 = vmatpush1.msra.mxu0 0.0
    %426 = vmatprep.subr.mxu0 0.0
    %427 = vmatpush1.msra.mxu0 0.0
    %428 = vmatprep.subr.mxu0 0.0
    %429 = vmatpush1.msra.mxu0 0.0
    %430 = vmatprep.subr.mxu0 0.0
    %431 = vmatpush1.msra.mxu0 0.0
    %432 = vmatprep.subr.mxu0 0.0
    %433 = vmatpush1.msra.mxu0 0.0
    %434 = vmatprep.subr.mxu0 0.0
    %435 = vmatpush1.msra.mxu0 0.0
    %436 = vmatprep.subr.mxu0 0.0
    %437 = vmatpush1.msra.mxu0 0.0
    %438 = vmatprep.subr.mxu0 0.0
    %439 = vmatpush1.msra.mxu0 0.0
    %440 = vmatprep.subr.mxu0 0.0
    %441 = vmatpush1.msra.mxu0 0.0
    %442 = vmatprep.mubr.f32.mxu0 0.0
    %443 = vmatmul.mubr.f32.gmra.mrb[0].mxu0 %v376
    %v444 = vpop.f32.mrb[0].mxu0
    %v445 = vadd.f32 0.0, %v444
    %v446 = vpop.f32.mrb[0].mxu0
    %447 = vdwg.mxu0
    %448 = vmatprep.subr.mxu0 0.0
    %449 = vmatpush1.msra.mxu0 %v109
    %450 = vmatprep.subr.mxu0 0.0
    %451 = vmatpush1.msra.mxu0 %v110
    %452 = vmatprep.subr.mxu0 0.0
    %453 = vmatpush1.msra.mxu0 %v111
    %454 = vmatprep.subr.mxu0 0.0
    %455 = vmatpush1.msra.mxu0 %v112
    %456 = vmatprep.subr.mxu0 0.0
    %457 = vmatpush1.msra.mxu0 0.0
    %458 = vmatprep.subr.mxu0 0.0
    %459 = vmatpush1.msra.mxu0 0.0
    %460 = vmatprep.subr.mxu0 0.0
    %461 = vmatpush1.msra.mxu0 0.0
    %462 = vmatprep.subr.mxu0 0.0
    %463 = vmatpush1.msra.mxu0 0.0
    %464 = vmatprep.subr.mxu0 0.0
    %465 = vmatpush1.msra.mxu0 0.0
    %466 = vmatprep.subr.mxu0 0.0
    %467 = vmatpush1.msra.mxu0 0.0
    %468 = vmatprep.subr.mxu0 0.0
    %469 = vmatpush1.msra.mxu0 0.0
    %470 = vmatprep.subr.mxu0 0.0
    %471 = vmatpush1.msra.mxu0 0.0
    %472 = vmatprep.subr.mxu0 0.0
    %473 = vmatpush1.msra.mxu0 0.0
    %474 = vmatprep.subr.mxu0 0.0
    %475 = vmatpush1.msra.mxu0 0.0
    %476 = vmatprep.subr.mxu0 0.0
    %477 = vmatpush1.msra.mxu0 0.0
    %478 = vmatprep.subr.mxu0 0.0
    %479 = vmatpush1.msra.mxu0 0.0
    %480 = vmatprep.subr.mxu0 0.0
    %481 = vmatpush1.msra.mxu0 0.0
    %482 = vmatprep.subr.mxu0 0.0
    %483 = vmatpush1.msra.mxu0 0.0
    %484 = vmatprep.subr.mxu0 0.0
    %485 = vmatpush1.msra.mxu0 0.0
    %486 = vmatprep.subr.mxu0 0.0
    %487 = vmatpush1.msra.mxu0 0.0
    %488 = vmatprep.subr.mxu0 0.0
    %489 = vmatpush1.msra.mxu0 0.0
    %490 = vmatprep.subr.mxu0 0.0
    %491 = vmatpush1.msra.mxu0 0.0
    %492 = vmatprep.subr.mxu0 0.0
    %493 = vmatpush1.msra.mxu0 0.0
    %494 = vmatprep.subr.mxu0 0.0
    %495 = vmatpush1.msra.mxu0 0.0
    %496 = vmatprep.subr.mxu0 0.0
    %497 = vmatpush1.msra.mxu0 0.0
    %498 = vmatprep.subr.mxu0 0.0
    %499 = vmatpush1.msra.mxu0 0.0
    %500 = vmatprep.subr.mxu0 0.0
    %501 = vmatpush1.msra.mxu0 0.0
    %502 = vmatprep.subr.mxu0 0.0
    %503 = vmatpush1.msra.mxu0 0.0
    %504 = vmatprep.subr.mxu0 0.0
    %505 = vmatpush1.msra.mxu0 0.0
    %506 = vmatprep.subr.mxu0 0.0
    %507 = vmatpush1.msra.mxu0 0.0
    %508 = vmatprep.subr.mxu0 0.0
    %509 = vmatpush1.msra.mxu0 0.0
    %510 = vmatprep.subr.mxu0 0.0
    %511 = vmatpush1.msra.mxu0 0.0
    %512 = vmatprep.mubr.f32.mxu0 0.0
    %513 = vmatmul.mubr.f32.gmra.mrb[0].mxu0 %v376
    %v514 = vpop.f32.mrb[0].mxu0
    %v515 = vadd.f32 0.0, %v514
    %v516 = vpop.f32.mrb[0].mxu0
    %517 = vdwg.mxu0
    %v518 = vadd.f32 %v368, %v445
    %v519 = vxor.u32 %v518, 2147483648
    %v520 = vmul.f32 %v519, 1.442695
    %v521 = vpow.pop %v520
    %v522 = vadd.f32 %v521, 1.0
    %v523 = vrcp.pop %v522
    %v524 = vmul.f32 1.0, %v523
    %v525 = vadd.f32 %v370, %v515
    %v526 = vxor.u32 %v525, 2147483648
    %v527 = vmul.f32 %v526, 1.442695
    %v528 = vpow.pop %v527
    %v529 = vadd.f32 %v528, 1.0
    %v530 = vrcp.pop %v529
    %v531 = vmul.f32 1.0, %v530
    %532 = vmatprep.subr.mxu0 0.0
    %533 = vmatpush1.msra.mxu0 %v113
    %534 = vmatprep.subr.mxu0 0.0
    %535 = vmatpush1.msra.mxu0 %v114
    %536 = vmatprep.subr.mxu0 0.0
    %537 = vmatpush1.msra.mxu0 %v115
    %538 = vmatprep.subr.mxu0 0.0
    %539 = vmatpush1.msra.mxu0 %v116
    %540 = vmatprep.subr.mxu0 0.0
    %541 = vmatpush1.msra.mxu0 0.0
    %542 = vmatprep.subr.mxu0 0.0
    %543 = vmatpush1.msra.mxu0 0.0
    %544 = vmatprep.subr.mxu0 0.0
    %545 = vmatpush1.msra.mxu0 0.0
    %546 = vmatprep.subr.mxu0 0.0
    %547 = vmatpush1.msra.mxu0 0.0
    %548 = vmatprep.subr.mxu0 0.0
    %549 = vmatpush1.msra.mxu0 0.0
    %550 = vmatprep.subr.mxu0 0.0
    %551 = vmatpush1.msra.mxu0 0.0
    %552 = vmatprep.subr.mxu0 0.0
    %553 = vmatpush1.msra.mxu0 0.0
    %554 = vmatprep.subr.mxu0 0.0
    %555 = vmatpush1.msra.mxu0 0.0
    %556 = vmatprep.subr.mxu0 0.0
    %557 = vmatpush1.msra.mxu0 0.0
    %558 = vmatprep.subr.mxu0 0.0
    %559 = vmatpush1.msra.mxu0 0.0
    %560 = vmatprep.subr.mxu0 0.0
    %561 = vmatpush1.msra.mxu0 0.0
    %562 = vmatprep.subr.mxu0 0.0
    %563 = vmatpush1.msra.mxu0 0.0
    %564 = vmatprep.subr.mxu0 0.0
    %565 = vmatpush1.msra.mxu0 0.0
    %566 = vmatprep.subr.mxu0 0.0
    %567 = vmatpush1.msra.mxu0 0.0
    %568 = vmatprep.subr.mxu0 0.0
    %569 = vmatpush1.msra.mxu0 0.0
    %570 = vmatprep.subr.mxu0 0.0
    %571 = vmatpush1.msra.mxu0 0.0
    %572 = vmatprep.subr.mxu0 0.0
    %573 = vmatpush1.msra.mxu0 0.0
    %574 = vmatprep.subr.mxu0 0.0
    %575 = vmatpush1.msra.mxu0 0.0
    %576 = vmatprep.subr.mxu0 0.0
    %577 = vmatpush1.msra.mxu0 0.0
    %578 = vmatprep.subr.mxu0 0.0
    %579 = vmatpush1.msra.mxu0 0.0
    %580 = vmatprep.subr.mxu0 0.0
    %581 = vmatpush1.msra.mxu0 0.0
    %582 = vmatprep.subr.mxu0 0.0
    %583 = vmatpush1.msra.mxu0 0.0
    %584 = vmatprep.subr.mxu0 0.0
    %585 = vmatpush1.msra.mxu0 0.0
    %586 = vmatprep.subr.mxu0 0.0
    %587 = vmatpush1.msra.mxu0 0.0
    %588 = vmatprep.subr.mxu0 0.0
    %589 = vmatpush1.msra.mxu0 0.0
    %590 = vmatprep.subr.mxu0 0.0
    %591 = vmatpush1.msra.mxu0 0.0
    %592 = vmatprep.subr.mxu0 0.0
    %593 = vmatpush1.msra.mxu0 0.0
    %594 = vmatprep.subr.mxu0 0.0
    %595 = vmatpush1.msra.mxu0 0.0
    %596 = vmatprep.mubr.f32.mxu0 0.0
    %597 = vmatmul.mubr.f32.gmra.mrb[0].mxu0 %v376
    %v598 = vpop.f32.mrb[0].mxu0
    %v599 = vadd.f32 %v287, %v598
    %v600 = vpop.f32.mrb[0].mxu0
    %601 = vdwg.mxu0
    %v602 = vmul.f32 %v524, %v599
    %v603 = vadd.f32 %v372, %v602
    %v604 = vtanh.pop %v603
    %v605 = vsub.f32 1.0, %v531
    %v606 = vmul.f32 %v605, %v604
    %v607 = vmul.f32 %v531, %v364
    %v608 = vadd.f32 %v606, %v607
    %v609 = vmul.f32 %v374, %v608
    %v610 = vadd.f32 %v366, %v609
    %s611 = scalar_lea.vmem %s1, 18
    %v612 = vld [vmem:[%s611] sm:$0x3]
    %s613 = scalar_lea.vmem %s1, 20
    %v614 = vld [vmem:[%s613] sm:$0x3]
    %s615 = scalar_lea.vmem %s1, 22
    %v616 = vld [vmem:[%s615] sm:$0x3]
    %s617 = scalar_lea.vmem %s1, 24
    %v618 = vld [vmem:[%s617] sm:$0x3]
    %v620 = vsel %vm126, %v608, 0
    %622 = vmatprep.subr.mxu0 0.0
    %623 = vmatpush1.msra.mxu0 %v105
    %624 = vmatprep.subr.mxu0 0.0
    %625 = vmatpush1.msra.mxu0 %v106
    %626 = vmatprep.subr.mxu0 0.0
    %627 = vmatpush1.msra.mxu0 %v107
    %628 = vmatprep.subr.mxu0 0.0
    %629 = vmatpush1.msra.mxu0 %v108
    %630 = vmatprep.subr.mxu0 0.0
    %631 = vmatpush1.msra.mxu0 0.0
    %632 = vmatprep.subr.mxu0 0.0
    %633 = vmatpush1.msra.mxu0 0.0
    %634 = vmatprep.subr.mxu0 0.0
    %635 = vmatpush1.msra.mxu0 0.0
    %636 = vmatprep.subr.mxu0 0.0
    %637 = vmatpush1.msra.mxu0 0.0
    %638 = vmatprep.subr.mxu0 0.0
    %639 = vmatpush1.msra.mxu0 0.0
    %640 = vmatprep.subr.mxu0 0.0
    %641 = vmatpush1.msra.mxu0 0.0
    %642 = vmatprep.subr.mxu0 0.0
    %643 = vmatpush1.msra.mxu0 0.0
    %644 = vmatprep.subr.mxu0 0.0
    %645 = vmatpush1.msra.mxu0 0.0
    %646 = vmatprep.subr.mxu0 0.0
    %647 = vmatpush1.msra.mxu0 0.0
    %648 = vmatprep.subr.mxu0 0.0
    %649 = vmatpush1.msra.mxu0 0.0
    %650 = vmatprep.subr.mxu0 0.0
    %651 = vmatpush1.msra.mxu0 0.0
    %652 = vmatprep.subr.mxu0 0.0
    %653 = vmatpush1.msra.mxu0 0.0
    %654 = vmatprep.subr.mxu0 0.0
    %655 = vmatpush1.msra.mxu0 0.0
    %656 = vmatprep.subr.mxu0 0.0
    %657 = vmatpush1.msra.mxu0 0.0
    %658 = vmatprep.subr.mxu0 0.0
    %659 = vmatpush1.msra.mxu0 0.0
    %660 = vmatprep.subr.mxu0 0.0
    %661 = vmatpush1.msra.mxu0 0.0
    %662 = vmatprep.subr.mxu0 0.0
    %663 = vmatpush1.msra.mxu0 0.0
    %664 = vmatprep.subr.mxu0 0.0
    %665 = vmatpush1.msra.mxu0 0.0
    %666 = vmatprep.subr.mxu0 0.0
    %667 = vmatpush1.msra.mxu0 0.0
    %668 = vmatprep.subr.mxu0 0.0
    %669 = vmatpush1.msra.mxu0 0.0
    %670 = vmatprep.subr.mxu0 0.0
    %671 = vmatpush1.msra.mxu0 0.0
    %672 = vmatprep.subr.mxu0 0.0
    %673 = vmatpush1.msra.mxu0 0.0
    %674 = vmatprep.subr.mxu0 0.0
    %675 = vmatpush1.msra.mxu0 0.0
    %676 = vmatprep.subr.mxu0 0.0
    %677 = vmatpush1.msra.mxu0 0.0
    %678 = vmatprep.subr.mxu0 0.0
    %679 = vmatpush1.msra.mxu0 0.0
    %680 = vmatprep.subr.mxu0 0.0
    %681 = vmatpush1.msra.mxu0 0.0
    %682 = vmatprep.subr.mxu0 0.0
    %683 = vmatpush1.msra.mxu0 0.0
    %684 = vmatprep.subr.mxu0 0.0
    %685 = vmatpush1.msra.mxu0 0.0
    %686 = vmatprep.mubr.f32.mxu0 0.0
    %687 = vmatmul.mubr.f32.gmra.mrb[0].mxu0 %v620
    %v688 = vpop.f32.mrb[0].mxu0
    %v689 = vadd.f32 0.0, %v688
    %v690 = vpop.f32.mrb[0].mxu0
    %691 = vdwg.mxu0
    %692 = vmatprep.subr.mxu0 0.0
    %693 = vmatpush1.msra.mxu0 %v109
    %694 = vmatprep.subr.mxu0 0.0
    %695 = vmatpush1.msra.mxu0 %v110
    %696 = vmatprep.subr.mxu0 0.0
    %697 = vmatpush1.msra.mxu0 %v111
    %698 = vmatprep.subr.mxu0 0.0
    %699 = vmatpush1.msra.mxu0 %v112
    %700 = vmatprep.subr.mxu0 0.0
    %701 = vmatpush1.msra.mxu0 0.0
    %702 = vmatprep.subr.mxu0 0.0
    %703 = vmatpush1.msra.mxu0 0.0
    %704 = vmatprep.subr.mxu0 0.0
    %705 = vmatpush1.msra.mxu0 0.0
    %706 = vmatprep.subr.mxu0 0.0
    %707 = vmatpush1.msra.mxu0 0.0
    %708 = vmatprep.subr.mxu0 0.0
    %709 = vmatpush1.msra.mxu0 0.0
    %710 = vmatprep.subr.mxu0 0.0
    %711 = vmatpush1.msra.mxu0 0.0
    %712 = vmatprep.subr.mxu0 0.0
    %713 = vmatpush1.msra.mxu0 0.0
    %714 = vmatprep.subr.mxu0 0.0
    %715 = vmatpush1.msra.mxu0 0.0
    %716 = vmatprep.subr.mxu0 0.0
    %717 = vmatpush1.msra.mxu0 0.0
    %718 = vmatprep.subr.mxu0 0.0
    %719 = vmatpush1.msra.mxu0 0.0
    %720 = vmatprep.subr.mxu0 0.0
    %721 = vmatpush1.msra.mxu0 0.0
    %722 = vmatprep.subr.mxu0 0.0
    %723 = vmatpush1.msra.mxu0 0.0
    %724 = vmatprep.subr.mxu0 0.0
    %725 = vmatpush1.msra.mxu0 0.0
    %726 = vmatprep.subr.mxu0 0.0
    %727 = vmatpush1.msra.mxu0 0.0
    %728 = vmatprep.subr.mxu0 0.0
    %729 = vmatpush1.msra.mxu0 0.0
    %730 = vmatprep.subr.mxu0 0.0
    %731 = vmatpush1.msra.mxu0 0.0
    %732 = vmatprep.subr.mxu0 0.0
    %733 = vmatpush1.msra.mxu0 0.0
    %734 = vmatprep.subr.mxu0 0.0
    %735 = vmatpush1.msra.mxu0 0.0
    %736 = vmatprep.subr.mxu0 0.0
    %737 = vmatpush1.msra.mxu0 0.0
    %738 = vmatprep.subr.mxu0 0.0
    %739 = vmatpush1.msra.mxu0 0.0
    %740 = vmatprep.subr.mxu0 0.0
    %741 = vmatpush1.msra.mxu0 0.0
    %742 = vmatprep.subr.mxu0 0.0
    %743 = vmatpush1.msra.mxu0 0.0
    %744 = vmatprep.subr.mxu0 0.0
    %745 = vmatpush1.msra.mxu0 0.0
    %746 = vmatprep.subr.mxu0 0.0
    %747 = vmatpush1.msra.mxu0 0.0
    %748 = vmatprep.subr.mxu0 0.0
    %749 = vmatpush1.msra.mxu0 0.0
    %750 = vmatprep.subr.mxu0 0.0
    %751 = vmatpush1.msra.mxu0 0.0
    %752 = vmatprep.subr.mxu0 0.0
    %753 = vmatpush1.msra.mxu0 0.0
    %754 = vmatprep.subr.mxu0 0.0
    %755 = vmatpush1.msra.mxu0 0.0
    %756 = vmatprep.mubr.f32.mxu0 0.0
    %757 = vmatmul.mubr.f32.gmra.mrb[0].mxu0 %v620
    %v758 = vpop.f32.mrb[0].mxu0
    %v759 = vadd.f32 0.0, %v758
    %v760 = vpop.f32.mrb[0].mxu0
    %761 = vdwg.mxu0
    %v762 = vadd.f32 %v612, %v689
    %v763 = vxor.u32 %v762, 2147483648
    %v764 = vmul.f32 %v763, 1.442695
    %v765 = vpow.pop %v764
    %v766 = vadd.f32 %v765, 1.0
    %v767 = vrcp.pop %v766
    %v768 = vmul.f32 1.0, %v767
    %v769 = vadd.f32 %v614, %v759
    %v770 = vxor.u32 %v769, 2147483648
    %v771 = vmul.f32 %v770, 1.442695
    %v772 = vpow.pop %v771
    %v773 = vadd.f32 %v772, 1.0
    %v774 = vrcp.pop %v773
    %v775 = vmul.f32 1.0, %v774
    %776 = vmatprep.subr.mxu0 0.0
    %777 = vmatpush1.msra.mxu0 %v113
    %778 = vmatprep.subr.mxu0 0.0
    %779 = vmatpush1.msra.mxu0 %v114
    %780 = vmatprep.subr.mxu0 0.0
    %781 = vmatpush1.msra.mxu0 %v115
    %782 = vmatprep.subr.mxu0 0.0
    %783 = vmatpush1.msra.mxu0 %v116
    %784 = vmatprep.subr.mxu0 0.0
    %785 = vmatpush1.msra.mxu0 0.0
    %786 = vmatprep.subr.mxu0 0.0
    %787 = vmatpush1.msra.mxu0 0.0
    %788 = vmatprep.subr.mxu0 0.0
    %789 = vmatpush1.msra.mxu0 0.0
    %790 = vmatprep.subr.mxu0 0.0
    %791 = vmatpush1.msra.mxu0 0.0
    %792 = vmatprep.subr.mxu0 0.0
    %793 = vmatpush1.msra.mxu0 0.0
    %794 = vmatprep.subr.mxu0 0.0
    %795 = vmatpush1.msra.mxu0 0.0
    %796 = vmatprep.subr.mxu0 0.0
    %797 = vmatpush1.msra.mxu0 0.0
    %798 = vmatprep.subr.mxu0 0.0
    %799 = vmatpush1.msra.mxu0 0.0
    %800 = vmatprep.subr.mxu0 0.0
    %801 = vmatpush1.msra.mxu0 0.0
    %802 = vmatprep.subr.mxu0 0.0
    %803 = vmatpush1.msra.mxu0 0.0
    %804 = vmatprep.subr.mxu0 0.0
    %805 = vmatpush1.msra.mxu0 0.0
    %806 = vmatprep.subr.mxu0 0.0
    %807 = vmatpush1.msra.mxu0 0.0
    %808 = vmatprep.subr.mxu0 0.0
    %809 = vmatpush1.msra.mxu0 0.0
    %810 = vmatprep.subr.mxu0 0.0
    %811 = vmatpush1.msra.mxu0 0.0
    %812 = vmatprep.subr.mxu0 0.0
    %813 = vmatpush1.msra.mxu0 0.0
    %814 = vmatprep.subr.mxu0 0.0
    %815 = vmatpush1.msra.mxu0 0.0
    %816 = vmatprep.subr.mxu0 0.0
    %817 = vmatpush1.msra.mxu0 0.0
    %818 = vmatprep.subr.mxu0 0.0
    %819 = vmatpush1.msra.mxu0 0.0
    %820 = vmatprep.subr.mxu0 0.0
    %821 = vmatpush1.msra.mxu0 0.0
    %822 = vmatprep.subr.mxu0 0.0
    %823 = vmatpush1.msra.mxu0 0.0
    %824 = vmatprep.subr.mxu0 0.0
    %825 = vmatpush1.msra.mxu0 0.0
    %826 = vmatprep.subr.mxu0 0.0
    %827 = vmatpush1.msra.mxu0 0.0
    %828 = vmatprep.subr.mxu0 0.0
    %829 = vmatpush1.msra.mxu0 0.0
    %830 = vmatprep.subr.mxu0 0.0
    %831 = vmatpush1.msra.mxu0 0.0
    %832 = vmatprep.subr.mxu0 0.0
    %833 = vmatpush1.msra.mxu0 0.0
    %834 = vmatprep.subr.mxu0 0.0
    %835 = vmatpush1.msra.mxu0 0.0
    %836 = vmatprep.subr.mxu0 0.0
    %837 = vmatpush1.msra.mxu0 0.0
    %838 = vmatprep.subr.mxu0 0.0
    %839 = vmatpush1.msra.mxu0 0.0
    %840 = vmatprep.mubr.f32.mxu0 0.0
    %841 = vmatmul.mubr.f32.gmra.mrb[0].mxu0 %v620
    %v842 = vpop.f32.mrb[0].mxu0
    %v843 = vadd.f32 %v287, %v842
    %v844 = vpop.f32.mrb[0].mxu0
    %845 = vdwg.mxu0
    %v846 = vmul.f32 %v768, %v843
    %v847 = vadd.f32 %v616, %v846
    %v848 = vtanh.pop %v847
    %v849 = vsub.f32 1.0, %v775
    %v850 = vmul.f32 %v849, %v848
    %v851 = vmul.f32 %v775, %v608
    %v852 = vadd.f32 %v850, %v851
    %v853 = vmul.f32 %v618, %v852
    %v854 = vadd.f32 %v610, %v853
    %s855 = scalar_lea.vmem %s1, 26
    %v856 = vld [vmem:[%s855] sm:$0x3]
    %s857 = scalar_lea.vmem %s1, 28
    %v858 = vld [vmem:[%s857] sm:$0x3]
    %s859 = scalar_lea.vmem %s1, 30
    %v860 = vld [vmem:[%s859] sm:$0x3]
    %s861 = scalar_lea.vmem %s1, 32
    %v862 = vld [vmem:[%s861] sm:$0x3]
    %v864 = vsel %vm126, %v852, 0
    %866 = vmatprep.subr.mxu0 0.0
    %867 = vmatpush1.msra.mxu0 %v105
    %868 = vmatprep.subr.mxu0 0.0
    %869 = vmatpush1.msra.mxu0 %v106
    %870 = vmatprep.subr.mxu0 0.0
    %871 = vmatpush1.msra.mxu0 %v107
    %872 = vmatprep.subr.mxu0 0.0
    %873 = vmatpush1.msra.mxu0 %v108
    %874 = vmatprep.subr.mxu0 0.0
    %875 = vmatpush1.msra.mxu0 0.0
    %876 = vmatprep.subr.mxu0 0.0
    %877 = vmatpush1.msra.mxu0 0.0
    %878 = vmatprep.subr.mxu0 0.0
    %879 = vmatpush1.msra.mxu0 0.0
    %880 = vmatprep.subr.mxu0 0.0
    %881 = vmatpush1.msra.mxu0 0.0
    %882 = vmatprep.subr.mxu0 0.0
    %883 = vmatpush1.msra.mxu0 0.0
    %884 = vmatprep.subr.mxu0 0.0
    %885 = vmatpush1.msra.mxu0 0.0
    %886 = vmatprep.subr.mxu0 0.0
    %887 = vmatpush1.msra.mxu0 0.0
    %888 = vmatprep.subr.mxu0 0.0
    %889 = vmatpush1.msra.mxu0 0.0
    %890 = vmatprep.subr.mxu0 0.0
    %891 = vmatpush1.msra.mxu0 0.0
    %892 = vmatprep.subr.mxu0 0.0
    %893 = vmatpush1.msra.mxu0 0.0
    %894 = vmatprep.subr.mxu0 0.0
    %895 = vmatpush1.msra.mxu0 0.0
    %896 = vmatprep.subr.mxu0 0.0
    %897 = vmatpush1.msra.mxu0 0.0
    %898 = vmatprep.subr.mxu0 0.0
    %899 = vmatpush1.msra.mxu0 0.0
    %900 = vmatprep.subr.mxu0 0.0
    %901 = vmatpush1.msra.mxu0 0.0
    %902 = vmatprep.subr.mxu0 0.0
    %903 = vmatpush1.msra.mxu0 0.0
    %904 = vmatprep.subr.mxu0 0.0
    %905 = vmatpush1.msra.mxu0 0.0
    %906 = vmatprep.subr.mxu0 0.0
    %907 = vmatpush1.msra.mxu0 0.0
    %908 = vmatprep.subr.mxu0 0.0
    %909 = vmatpush1.msra.mxu0 0.0
    %910 = vmatprep.subr.mxu0 0.0
    %911 = vmatpush1.msra.mxu0 0.0
    %912 = vmatprep.subr.mxu0 0.0
    %913 = vmatpush1.msra.mxu0 0.0
    %914 = vmatprep.subr.mxu0 0.0
    %915 = vmatpush1.msra.mxu0 0.0
    %916 = vmatprep.subr.mxu0 0.0
    %917 = vmatpush1.msra.mxu0 0.0
    %918 = vmatprep.subr.mxu0 0.0
    %919 = vmatpush1.msra.mxu0 0.0
    %920 = vmatprep.subr.mxu0 0.0
    %921 = vmatpush1.msra.mxu0 0.0
    %922 = vmatprep.subr.mxu0 0.0
    %923 = vmatpush1.msra.mxu0 0.0
    %924 = vmatprep.subr.mxu0 0.0
    %925 = vmatpush1.msra.mxu0 0.0
    %926 = vmatprep.subr.mxu0 0.0
    %927 = vmatpush1.msra.mxu0 0.0
    %928 = vmatprep.subr.mxu0 0.0
    %929 = vmatpush1.msra.mxu0 0.0
    %930 = vmatprep.mubr.f32.mxu0 0.0
    %931 = vmatmul.mubr.f32.gmra.mrb[0].mxu0 %v864
    %v932 = vpop.f32.mrb[0].mxu0
    %v933 = vadd.f32 0.0, %v932
    %v934 = vpop.f32.mrb[0].mxu0
    %935 = vdwg.mxu0
    %936 = vmatprep.subr.mxu0 0.0
    %937 = vmatpush1.msra.mxu0 %v109
    %938 = vmatprep.subr.mxu0 0.0
    %939 = vmatpush1.msra.mxu0 %v110
    %940 = vmatprep.subr.mxu0 0.0
    %941 = vmatpush1.msra.mxu0 %v111
    %942 = vmatprep.subr.mxu0 0.0
    %943 = vmatpush1.msra.mxu0 %v112
    %944 = vmatprep.subr.mxu0 0.0
    %945 = vmatpush1.msra.mxu0 0.0
    %946 = vmatprep.subr.mxu0 0.0
    %947 = vmatpush1.msra.mxu0 0.0
    %948 = vmatprep.subr.mxu0 0.0
    %949 = vmatpush1.msra.mxu0 0.0
    %950 = vmatprep.subr.mxu0 0.0
    %951 = vmatpush1.msra.mxu0 0.0
    %952 = vmatprep.subr.mxu0 0.0
    %953 = vmatpush1.msra.mxu0 0.0
    %954 = vmatprep.subr.mxu0 0.0
    %955 = vmatpush1.msra.mxu0 0.0
    %956 = vmatprep.subr.mxu0 0.0
    %957 = vmatpush1.msra.mxu0 0.0
    %958 = vmatprep.subr.mxu0 0.0
    %959 = vmatpush1.msra.mxu0 0.0
    %960 = vmatprep.subr.mxu0 0.0
    %961 = vmatpush1.msra.mxu0 0.0
    %962 = vmatprep.subr.mxu0 0.0
    %963 = vmatpush1.msra.mxu0 0.0
    %964 = vmatprep.subr.mxu0 0.0
    %965 = vmatpush1.msra.mxu0 0.0
    %966 = vmatprep.subr.mxu0 0.0
    %967 = vmatpush1.msra.mxu0 0.0
    %968 = vmatprep.subr.mxu0 0.0
    %969 = vmatpush1.msra.mxu0 0.0
    %970 = vmatprep.subr.mxu0 0.0
    %971 = vmatpush1.msra.mxu0 0.0
    %972 = vmatprep.subr.mxu0 0.0
    %973 = vmatpush1.msra.mxu0 0.0
    %974 = vmatprep.subr.mxu0 0.0
    %975 = vmatpush1.msra.mxu0 0.0
    %976 = vmatprep.subr.mxu0 0.0
    %977 = vmatpush1.msra.mxu0 0.0
    %978 = vmatprep.subr.mxu0 0.0
    %979 = vmatpush1.msra.mxu0 0.0
    %980 = vmatprep.subr.mxu0 0.0
    %981 = vmatpush1.msra.mxu0 0.0
    %982 = vmatprep.subr.mxu0 0.0
    %983 = vmatpush1.msra.mxu0 0.0
    %984 = vmatprep.subr.mxu0 0.0
    %985 = vmatpush1.msra.mxu0 0.0
    %986 = vmatprep.subr.mxu0 0.0
    %987 = vmatpush1.msra.mxu0 0.0
    %988 = vmatprep.subr.mxu0 0.0
    %989 = vmatpush1.msra.mxu0 0.0
    %990 = vmatprep.subr.mxu0 0.0
    %991 = vmatpush1.msra.mxu0 0.0
    %992 = vmatprep.subr.mxu0 0.0
    %993 = vmatpush1.msra.mxu0 0.0
    %994 = vmatprep.subr.mxu0 0.0
    %995 = vmatpush1.msra.mxu0 0.0
    %996 = vmatprep.subr.mxu0 0.0
    %997 = vmatpush1.msra.mxu0 0.0
    %998 = vmatprep.subr.mxu0 0.0
    %999 = vmatpush1.msra.mxu0 0.0
    %1000 = vmatprep.mubr.f32.mxu0 0.0
    %1001 = vmatmul.mubr.f32.gmra.mrb[0].mxu0 %v864
    %v1002 = vpop.f32.mrb[0].mxu0
    %v1003 = vadd.f32 0.0, %v1002
    %v1004 = vpop.f32.mrb[0].mxu0
    %1005 = vdwg.mxu0
    %v1006 = vadd.f32 %v856, %v933
    %v1007 = vxor.u32 %v1006, 2147483648
    %v1008 = vmul.f32 %v1007, 1.442695
    %v1009 = vpow.pop %v1008
    %v1010 = vadd.f32 %v1009, 1.0
    %v1011 = vrcp.pop %v1010
    %v1012 = vmul.f32 1.0, %v1011
    %v1013 = vadd.f32 %v858, %v1003
    %v1014 = vxor.u32 %v1013, 2147483648
    %v1015 = vmul.f32 %v1014, 1.442695
    %v1016 = vpow.pop %v1015
    %v1017 = vadd.f32 %v1016, 1.0
    %v1018 = vrcp.pop %v1017
    %v1019 = vmul.f32 1.0, %v1018
    %1020 = vmatprep.subr.mxu0 0.0
    %1021 = vmatpush1.msra.mxu0 %v113
    %1022 = vmatprep.subr.mxu0 0.0
    %1023 = vmatpush1.msra.mxu0 %v114
    %1024 = vmatprep.subr.mxu0 0.0
    %1025 = vmatpush1.msra.mxu0 %v115
    %1026 = vmatprep.subr.mxu0 0.0
    %1027 = vmatpush1.msra.mxu0 %v116
    %1028 = vmatprep.subr.mxu0 0.0
    %1029 = vmatpush1.msra.mxu0 0.0
    %1030 = vmatprep.subr.mxu0 0.0
    %1031 = vmatpush1.msra.mxu0 0.0
    %1032 = vmatprep.subr.mxu0 0.0
    %1033 = vmatpush1.msra.mxu0 0.0
    %1034 = vmatprep.subr.mxu0 0.0
    %1035 = vmatpush1.msra.mxu0 0.0
    %1036 = vmatprep.subr.mxu0 0.0
    %1037 = vmatpush1.msra.mxu0 0.0
    %1038 = vmatprep.subr.mxu0 0.0
    %1039 = vmatpush1.msra.mxu0 0.0
    %1040 = vmatprep.subr.mxu0 0.0
    %1041 = vmatpush1.msra.mxu0 0.0
    %1042 = vmatprep.subr.mxu0 0.0
    %1043 = vmatpush1.msra.mxu0 0.0
    %1044 = vmatprep.subr.mxu0 0.0
    %1045 = vmatpush1.msra.mxu0 0.0
    %1046 = vmatprep.subr.mxu0 0.0
    %1047 = vmatpush1.msra.mxu0 0.0
    %1048 = vmatprep.subr.mxu0 0.0
    %1049 = vmatpush1.msra.mxu0 0.0
    %1050 = vmatprep.subr.mxu0 0.0
    %1051 = vmatpush1.msra.mxu0 0.0
    %1052 = vmatprep.subr.mxu0 0.0
    %1053 = vmatpush1.msra.mxu0 0.0
    %1054 = vmatprep.subr.mxu0 0.0
    %1055 = vmatpush1.msra.mxu0 0.0
    %1056 = vmatprep.subr.mxu0 0.0
    %1057 = vmatpush1.msra.mxu0 0.0
    %1058 = vmatprep.subr.mxu0 0.0
    %1059 = vmatpush1.msra.mxu0 0.0
    %1060 = vmatprep.subr.mxu0 0.0
    %1061 = vmatpush1.msra.mxu0 0.0
    %1062 = vmatprep.subr.mxu0 0.0
    %1063 = vmatpush1.msra.mxu0 0.0
    %1064 = vmatprep.subr.mxu0 0.0
    %1065 = vmatpush1.msra.mxu0 0.0
    %1066 = vmatprep.subr.mxu0 0.0
    %1067 = vmatpush1.msra.mxu0 0.0
    %1068 = vmatprep.subr.mxu0 0.0
    %1069 = vmatpush1.msra.mxu0 0.0
    %1070 = vmatprep.subr.mxu0 0.0
    %1071 = vmatpush1.msra.mxu0 0.0
    %1072 = vmatprep.subr.mxu0 0.0
    %1073 = vmatpush1.msra.mxu0 0.0
    %1074 = vmatprep.subr.mxu0 0.0
    %1075 = vmatpush1.msra.mxu0 0.0
    %1076 = vmatprep.subr.mxu0 0.0
    %1077 = vmatpush1.msra.mxu0 0.0
    %1078 = vmatprep.subr.mxu0 0.0
    %1079 = vmatpush1.msra.mxu0 0.0
    %1080 = vmatprep.subr.mxu0 0.0
    %1081 = vmatpush1.msra.mxu0 0.0
    %1082 = vmatprep.subr.mxu0 0.0
    %1083 = vmatpush1.msra.mxu0 0.0
    %1084 = vmatprep.mubr.f32.mxu0 0.0
    %1085 = vmatmul.mubr.f32.gmra.mrb[0].mxu0 %v864
    %v1086 = vpop.f32.mrb[0].mxu0
    %v1087 = vadd.f32 %v287, %v1086
    %v1088 = vpop.f32.mrb[0].mxu0
    %1089 = vdwg.mxu0
    %v1090 = vmul.f32 %v1012, %v1087
    %v1091 = vadd.f32 %v860, %v1090
    %v1092 = vtanh.pop %v1091
    %v1093 = vsub.f32 1.0, %v1019
    %v1094 = vmul.f32 %v1093, %v1092
    %v1095 = vmul.f32 %v1019, %v852
    %v1096 = vadd.f32 %v1094, %v1095
    %v1097 = vmul.f32 %v862, %v1096
    %v1098 = vadd.f32 %v854, %v1097
    %s1099 = scalar_lea.vmem %s1, 34
    %v1100 = vld [vmem:[%s1099] sm:$0x3]
    %s1101 = scalar_lea.vmem %s1, 36
    %v1102 = vld [vmem:[%s1101] sm:$0x3]
    %s1103 = scalar_lea.vmem %s1, 38
    %v1104 = vld [vmem:[%s1103] sm:$0x3]
    %s1105 = scalar_lea.vmem %s1, 40
    %v1106 = vld [vmem:[%s1105] sm:$0x3]
    %v1108 = vsel %vm126, %v1096, 0
    %1110 = vmatprep.subr.mxu0 0.0
    %1111 = vmatpush1.msra.mxu0 %v105
    %1112 = vmatprep.subr.mxu0 0.0
    %1113 = vmatpush1.msra.mxu0 %v106
    %1114 = vmatprep.subr.mxu0 0.0
    %1115 = vmatpush1.msra.mxu0 %v107
    %1116 = vmatprep.subr.mxu0 0.0
    %1117 = vmatpush1.msra.mxu0 %v108
    %1118 = vmatprep.subr.mxu0 0.0
    %1119 = vmatpush1.msra.mxu0 0.0
    %1120 = vmatprep.subr.mxu0 0.0
    %1121 = vmatpush1.msra.mxu0 0.0
    %1122 = vmatprep.subr.mxu0 0.0
    %1123 = vmatpush1.msra.mxu0 0.0
    %1124 = vmatprep.subr.mxu0 0.0
    %1125 = vmatpush1.msra.mxu0 0.0
    %1126 = vmatprep.subr.mxu0 0.0
    %1127 = vmatpush1.msra.mxu0 0.0
    %1128 = vmatprep.subr.mxu0 0.0
    %1129 = vmatpush1.msra.mxu0 0.0
    %1130 = vmatprep.subr.mxu0 0.0
    %1131 = vmatpush1.msra.mxu0 0.0
    %1132 = vmatprep.subr.mxu0 0.0
    %1133 = vmatpush1.msra.mxu0 0.0
    %1134 = vmatprep.subr.mxu0 0.0
    %1135 = vmatpush1.msra.mxu0 0.0
    %1136 = vmatprep.subr.mxu0 0.0
    %1137 = vmatpush1.msra.mxu0 0.0
    %1138 = vmatprep.subr.mxu0 0.0
    %1139 = vmatpush1.msra.mxu0 0.0
    %1140 = vmatprep.subr.mxu0 0.0
    %1141 = vmatpush1.msra.mxu0 0.0
    %1142 = vmatprep.subr.mxu0 0.0
    %1143 = vmatpush1.msra.mxu0 0.0
    %1144 = vmatprep.subr.mxu0 0.0
    %1145 = vmatpush1.msra.mxu0 0.0
    %1146 = vmatprep.subr.mxu0 0.0
    %1147 = vmatpush1.msra.mxu0 0.0
    %1148 = vmatprep.subr.mxu0 0.0
    %1149 = vmatpush1.msra.mxu0 0.0
    %1150 = vmatprep.subr.mxu0 0.0
    %1151 = vmatpush1.msra.mxu0 0.0
    %1152 = vmatprep.subr.mxu0 0.0
    %1153 = vmatpush1.msra.mxu0 0.0
    %1154 = vmatprep.subr.mxu0 0.0
    %1155 = vmatpush1.msra.mxu0 0.0
    %1156 = vmatprep.subr.mxu0 0.0
    %1157 = vmatpush1.msra.mxu0 0.0
    %1158 = vmatprep.subr.mxu0 0.0
    %1159 = vmatpush1.msra.mxu0 0.0
    %1160 = vmatprep.subr.mxu0 0.0
    %1161 = vmatpush1.msra.mxu0 0.0
    %1162 = vmatprep.subr.mxu0 0.0
    %1163 = vmatpush1.msra.mxu0 0.0
    %1164 = vmatprep.subr.mxu0 0.0
    %1165 = vmatpush1.msra.mxu0 0.0
    %1166 = vmatprep.subr.mxu0 0.0
    %1167 = vmatpush1.msra.mxu0 0.0
    %1168 = vmatprep.subr.mxu0 0.0
    %1169 = vmatpush1.msra.mxu0 0.0
    %1170 = vmatprep.subr.mxu0 0.0
    %1171 = vmatpush1.msra.mxu0 0.0
    %1172 = vmatprep.subr.mxu0 0.0
    %1173 = vmatpush1.msra.mxu0 0.0
    %1174 = vmatprep.mubr.f32.mxu0 0.0
    %1175 = vmatmul.mubr.f32.gmra.mrb[0].mxu0 %v1108
    %v1176 = vpop.f32.mrb[0].mxu0
    %v1177 = vadd.f32 0.0, %v1176
    %v1178 = vpop.f32.mrb[0].mxu0
    %1179 = vdwg.mxu0
    %1180 = vmatprep.subr.mxu0 0.0
    %1181 = vmatpush1.msra.mxu0 %v109
    %1182 = vmatprep.subr.mxu0 0.0
    %1183 = vmatpush1.msra.mxu0 %v110
    %1184 = vmatprep.subr.mxu0 0.0
    %1185 = vmatpush1.msra.mxu0 %v111
    %1186 = vmatprep.subr.mxu0 0.0
    %1187 = vmatpush1.msra.mxu0 %v112
    %1188 = vmatprep.subr.mxu0 0.0
    %1189 = vmatpush1.msra.mxu0 0.0
    %1190 = vmatprep.subr.mxu0 0.0
    %1191 = vmatpush1.msra.mxu0 0.0
    %1192 = vmatprep.subr.mxu0 0.0
    %1193 = vmatpush1.msra.mxu0 0.0
    %1194 = vmatprep.subr.mxu0 0.0
    %1195 = vmatpush1.msra.mxu0 0.0
    %1196 = vmatprep.subr.mxu0 0.0
    %1197 = vmatpush1.msra.mxu0 0.0
    %1198 = vmatprep.subr.mxu0 0.0
    %1199 = vmatpush1.msra.mxu0 0.0
    %1200 = vmatprep.subr.mxu0 0.0
    %1201 = vmatpush1.msra.mxu0 0.0
    %1202 = vmatprep.subr.mxu0 0.0
    %1203 = vmatpush1.msra.mxu0 0.0
    %1204 = vmatprep.subr.mxu0 0.0
    %1205 = vmatpush1.msra.mxu0 0.0
    %1206 = vmatprep.subr.mxu0 0.0
    %1207 = vmatpush1.msra.mxu0 0.0
    %1208 = vmatprep.subr.mxu0 0.0
    %1209 = vmatpush1.msra.mxu0 0.0
    %1210 = vmatprep.subr.mxu0 0.0
    %1211 = vmatpush1.msra.mxu0 0.0
    %1212 = vmatprep.subr.mxu0 0.0
    %1213 = vmatpush1.msra.mxu0 0.0
    %1214 = vmatprep.subr.mxu0 0.0
    %1215 = vmatpush1.msra.mxu0 0.0
    %1216 = vmatprep.subr.mxu0 0.0
    %1217 = vmatpush1.msra.mxu0 0.0
    %1218 = vmatprep.subr.mxu0 0.0
    %1219 = vmatpush1.msra.mxu0 0.0
    %1220 = vmatprep.subr.mxu0 0.0
    %1221 = vmatpush1.msra.mxu0 0.0
    %1222 = vmatprep.subr.mxu0 0.0
    %1223 = vmatpush1.msra.mxu0 0.0
    %1224 = vmatprep.subr.mxu0 0.0
    %1225 = vmatpush1.msra.mxu0 0.0
    %1226 = vmatprep.subr.mxu0 0.0
    %1227 = vmatpush1.msra.mxu0 0.0
    %1228 = vmatprep.subr.mxu0 0.0
    %1229 = vmatpush1.msra.mxu0 0.0
    %1230 = vmatprep.subr.mxu0 0.0
    %1231 = vmatpush1.msra.mxu0 0.0
    %1232 = vmatprep.subr.mxu0 0.0
    %1233 = vmatpush1.msra.mxu0 0.0
    %1234 = vmatprep.subr.mxu0 0.0
    %1235 = vmatpush1.msra.mxu0 0.0
    %1236 = vmatprep.subr.mxu0 0.0
    %1237 = vmatpush1.msra.mxu0 0.0
    %1238 = vmatprep.subr.mxu0 0.0
    %1239 = vmatpush1.msra.mxu0 0.0
    %1240 = vmatprep.subr.mxu0 0.0
    %1241 = vmatpush1.msra.mxu0 0.0
    %1242 = vmatprep.subr.mxu0 0.0
    %1243 = vmatpush1.msra.mxu0 0.0
    %1244 = vmatprep.mubr.f32.mxu0 0.0
    %1245 = vmatmul.mubr.f32.gmra.mrb[0].mxu0 %v1108
    %v1246 = vpop.f32.mrb[0].mxu0
    %v1247 = vadd.f32 0.0, %v1246
    %v1248 = vpop.f32.mrb[0].mxu0
    %1249 = vdwg.mxu0
    %v1250 = vadd.f32 %v1100, %v1177
    %v1251 = vxor.u32 %v1250, 2147483648
    %v1252 = vmul.f32 %v1251, 1.442695
    %v1253 = vpow.pop %v1252
    %v1254 = vadd.f32 %v1253, 1.0
    %v1255 = vrcp.pop %v1254
    %v1256 = vmul.f32 1.0, %v1255
    %v1257 = vadd.f32 %v1102, %v1247
    %v1258 = vxor.u32 %v1257, 2147483648
    %v1259 = vmul.f32 %v1258, 1.442695
    %v1260 = vpow.pop %v1259
    %v1261 = vadd.f32 %v1260, 1.0
    %v1262 = vrcp.pop %v1261
    %v1263 = vmul.f32 1.0, %v1262
    %1264 = vmatprep.subr.mxu0 0.0
    %1265 = vmatpush1.msra.mxu0 %v113
    %1266 = vmatprep.subr.mxu0 0.0
    %1267 = vmatpush1.msra.mxu0 %v114
    %1268 = vmatprep.subr.mxu0 0.0
    %1269 = vmatpush1.msra.mxu0 %v115
    %1270 = vmatprep.subr.mxu0 0.0
    %1271 = vmatpush1.msra.mxu0 %v116
    %1272 = vmatprep.subr.mxu0 0.0
    %1273 = vmatpush1.msra.mxu0 0.0
    %1274 = vmatprep.subr.mxu0 0.0
    %1275 = vmatpush1.msra.mxu0 0.0
    %1276 = vmatprep.subr.mxu0 0.0
    %1277 = vmatpush1.msra.mxu0 0.0
    %1278 = vmatprep.subr.mxu0 0.0
    %1279 = vmatpush1.msra.mxu0 0.0
    %1280 = vmatprep.subr.mxu0 0.0
    %1281 = vmatpush1.msra.mxu0 0.0
    %1282 = vmatprep.subr.mxu0 0.0
    %1283 = vmatpush1.msra.mxu0 0.0
    %1284 = vmatprep.subr.mxu0 0.0
    %1285 = vmatpush1.msra.mxu0 0.0
    %1286 = vmatprep.subr.mxu0 0.0
    %1287 = vmatpush1.msra.mxu0 0.0
    %1288 = vmatprep.subr.mxu0 0.0
    %1289 = vmatpush1.msra.mxu0 0.0
    %1290 = vmatprep.subr.mxu0 0.0
    %1291 = vmatpush1.msra.mxu0 0.0
    %1292 = vmatprep.subr.mxu0 0.0
    %1293 = vmatpush1.msra.mxu0 0.0
    %1294 = vmatprep.subr.mxu0 0.0
    %1295 = vmatpush1.msra.mxu0 0.0
    %1296 = vmatprep.subr.mxu0 0.0
    %1297 = vmatpush1.msra.mxu0 0.0
    %1298 = vmatprep.subr.mxu0 0.0
    %1299 = vmatpush1.msra.mxu0 0.0
    %1300 = vmatprep.subr.mxu0 0.0
    %1301 = vmatpush1.msra.mxu0 0.0
    %1302 = vmatprep.subr.mxu0 0.0
    %1303 = vmatpush1.msra.mxu0 0.0
    %1304 = vmatprep.subr.mxu0 0.0
    %1305 = vmatpush1.msra.mxu0 0.0
    %1306 = vmatprep.subr.mxu0 0.0
    %1307 = vmatpush1.msra.mxu0 0.0
    %1308 = vmatprep.subr.mxu0 0.0
    %1309 = vmatpush1.msra.mxu0 0.0
    %1310 = vmatprep.subr.mxu0 0.0
    %1311 = vmatpush1.msra.mxu0 0.0
    %1312 = vmatprep.subr.mxu0 0.0
    %1313 = vmatpush1.msra.mxu0 0.0
    %1314 = vmatprep.subr.mxu0 0.0
    %1315 = vmatpush1.msra.mxu0 0.0
    %1316 = vmatprep.subr.mxu0 0.0
    %1317 = vmatpush1.msra.mxu0 0.0
    %1318 = vmatprep.subr.mxu0 0.0
    %1319 = vmatpush1.msra.mxu0 0.0
    %1320 = vmatprep.subr.mxu0 0.0
    %1321 = vmatpush1.msra.mxu0 0.0
    %1322 = vmatprep.subr.mxu0 0.0
    %1323 = vmatpush1.msra.mxu0 0.0
    %1324 = vmatprep.subr.mxu0 0.0
    %1325 = vmatpush1.msra.mxu0 0.0
    %1326 = vmatprep.subr.mxu0 0.0
    %1327 = vmatpush1.msra.mxu0 0.0
    %1328 = vmatprep.mubr.f32.mxu0 0.0
    %1329 = vmatmul.mubr.f32.gmra.mrb[0].mxu0 %v1108
    %v1330 = vpop.f32.mrb[0].mxu0
    %v1331 = vadd.f32 %v287, %v1330
    %v1332 = vpop.f32.mrb[0].mxu0
    %1333 = vdwg.mxu0
    %v1334 = vmul.f32 %v1256, %v1331
    %v1335 = vadd.f32 %v1104, %v1334
    %v1336 = vtanh.pop %v1335
    %v1337 = vsub.f32 1.0, %v1263
    %v1338 = vmul.f32 %v1337, %v1336
    %v1339 = vmul.f32 %v1263, %v1096
    %v1340 = vadd.f32 %v1338, %v1339
    %v1341 = vmul.f32 %v1106, %v1340
    %v1342 = vadd.f32 %v1098, %v1341
    %s1343 = scalar_lea.vmem %s1, 42
    %v1344 = vld [vmem:[%s1343] sm:$0x3]
    %s1345 = scalar_lea.vmem %s1, 44
    %v1346 = vld [vmem:[%s1345] sm:$0x3]
    %s1347 = scalar_lea.vmem %s1, 46
    %v1348 = vld [vmem:[%s1347] sm:$0x3]
    %s1349 = scalar_lea.vmem %s1, 48
    %v1350 = vld [vmem:[%s1349] sm:$0x3]
    %v1352 = vsel %vm126, %v1340, 0
    %1354 = vmatprep.subr.mxu0 0.0
    %1355 = vmatpush1.msra.mxu0 %v105
    %1356 = vmatprep.subr.mxu0 0.0
    %1357 = vmatpush1.msra.mxu0 %v106
    %1358 = vmatprep.subr.mxu0 0.0
    %1359 = vmatpush1.msra.mxu0 %v107
    %1360 = vmatprep.subr.mxu0 0.0
    %1361 = vmatpush1.msra.mxu0 %v108
    %1362 = vmatprep.subr.mxu0 0.0
    %1363 = vmatpush1.msra.mxu0 0.0
    %1364 = vmatprep.subr.mxu0 0.0
    %1365 = vmatpush1.msra.mxu0 0.0
    %1366 = vmatprep.subr.mxu0 0.0
    %1367 = vmatpush1.msra.mxu0 0.0
    %1368 = vmatprep.subr.mxu0 0.0
    %1369 = vmatpush1.msra.mxu0 0.0
    %1370 = vmatprep.subr.mxu0 0.0
    %1371 = vmatpush1.msra.mxu0 0.0
    %1372 = vmatprep.subr.mxu0 0.0
    %1373 = vmatpush1.msra.mxu0 0.0
    %1374 = vmatprep.subr.mxu0 0.0
    %1375 = vmatpush1.msra.mxu0 0.0
    %1376 = vmatprep.subr.mxu0 0.0
    %1377 = vmatpush1.msra.mxu0 0.0
    %1378 = vmatprep.subr.mxu0 0.0
    %1379 = vmatpush1.msra.mxu0 0.0
    %1380 = vmatprep.subr.mxu0 0.0
    %1381 = vmatpush1.msra.mxu0 0.0
    %1382 = vmatprep.subr.mxu0 0.0
    %1383 = vmatpush1.msra.mxu0 0.0
    %1384 = vmatprep.subr.mxu0 0.0
    %1385 = vmatpush1.msra.mxu0 0.0
    %1386 = vmatprep.subr.mxu0 0.0
    %1387 = vmatpush1.msra.mxu0 0.0
    %1388 = vmatprep.subr.mxu0 0.0
    %1389 = vmatpush1.msra.mxu0 0.0
    %1390 = vmatprep.subr.mxu0 0.0
    %1391 = vmatpush1.msra.mxu0 0.0
    %1392 = vmatprep.subr.mxu0 0.0
    %1393 = vmatpush1.msra.mxu0 0.0
    %1394 = vmatprep.subr.mxu0 0.0
    %1395 = vmatpush1.msra.mxu0 0.0
    %1396 = vmatprep.subr.mxu0 0.0
    %1397 = vmatpush1.msra.mxu0 0.0
    %1398 = vmatprep.subr.mxu0 0.0
    %1399 = vmatpush1.msra.mxu0 0.0
    %1400 = vmatprep.subr.mxu0 0.0
    %1401 = vmatpush1.msra.mxu0 0.0
    %1402 = vmatprep.subr.mxu0 0.0
    %1403 = vmatpush1.msra.mxu0 0.0
    %1404 = vmatprep.subr.mxu0 0.0
    %1405 = vmatpush1.msra.mxu0 0.0
    %1406 = vmatprep.subr.mxu0 0.0
    %1407 = vmatpush1.msra.mxu0 0.0
    %1408 = vmatprep.subr.mxu0 0.0
    %1409 = vmatpush1.msra.mxu0 0.0
    %1410 = vmatprep.subr.mxu0 0.0
    %1411 = vmatpush1.msra.mxu0 0.0
    %1412 = vmatprep.subr.mxu0 0.0
    %1413 = vmatpush1.msra.mxu0 0.0
    %1414 = vmatprep.subr.mxu0 0.0
    %1415 = vmatpush1.msra.mxu0 0.0
    %1416 = vmatprep.subr.mxu0 0.0
    %1417 = vmatpush1.msra.mxu0 0.0
    %1418 = vmatprep.mubr.f32.mxu0 0.0
    %1419 = vmatmul.mubr.f32.gmra.mrb[0].mxu0 %v1352
    %v1420 = vpop.f32.mrb[0].mxu0
    %v1421 = vadd.f32 0.0, %v1420
    %v1422 = vpop.f32.mrb[0].mxu0
    %1423 = vdwg.mxu0
    %1424 = vmatprep.subr.mxu0 0.0
    %1425 = vmatpush1.msra.mxu0 %v109
    %1426 = vmatprep.subr.mxu0 0.0
    %1427 = vmatpush1.msra.mxu0 %v110
    %1428 = vmatprep.subr.mxu0 0.0
    %1429 = vmatpush1.msra.mxu0 %v111
    %1430 = vmatprep.subr.mxu0 0.0
    %1431 = vmatpush1.msra.mxu0 %v112
    %1432 = vmatprep.subr.mxu0 0.0
    %1433 = vmatpush1.msra.mxu0 0.0
    %1434 = vmatprep.subr.mxu0 0.0
    %1435 = vmatpush1.msra.mxu0 0.0
    %1436 = vmatprep.subr.mxu0 0.0
    %1437 = vmatpush1.msra.mxu0 0.0
    %1438 = vmatprep.subr.mxu0 0.0
    %1439 = vmatpush1.msra.mxu0 0.0
    %1440 = vmatprep.subr.mxu0 0.0
    %1441 = vmatpush1.msra.mxu0 0.0
    %1442 = vmatprep.subr.mxu0 0.0
    %1443 = vmatpush1.msra.mxu0 0.0
    %1444 = vmatprep.subr.mxu0 0.0
    %1445 = vmatpush1.msra.mxu0 0.0
    %1446 = vmatprep.subr.mxu0 0.0
    %1447 = vmatpush1.msra.mxu0 0.0
    %1448 = vmatprep.subr.mxu0 0.0
    %1449 = vmatpush1.msra.mxu0 0.0
    %1450 = vmatprep.subr.mxu0 0.0
    %1451 = vmatpush1.msra.mxu0 0.0
    %1452 = vmatprep.subr.mxu0 0.0
    %1453 = vmatpush1.msra.mxu0 0.0
    %1454 = vmatprep.subr.mxu0 0.0
    %1455 = vmatpush1.msra.mxu0 0.0
    %1456 = vmatprep.subr.mxu0 0.0
    %1457 = vmatpush1.msra.mxu0 0.0
    %1458 = vmatprep.subr.mxu0 0.0
    %1459 = vmatpush1.msra.mxu0 0.0
    %1460 = vmatprep.subr.mxu0 0.0
    %1461 = vmatpush1.msra.mxu0 0.0
    %1462 = vmatprep.subr.mxu0 0.0
    %1463 = vmatpush1.msra.mxu0 0.0
    %1464 = vmatprep.subr.mxu0 0.0
    %1465 = vmatpush1.msra.mxu0 0.0
    %1466 = vmatprep.subr.mxu0 0.0
    %1467 = vmatpush1.msra.mxu0 0.0
    %1468 = vmatprep.subr.mxu0 0.0
    %1469 = vmatpush1.msra.mxu0 0.0
    %1470 = vmatprep.subr.mxu0 0.0
    %1471 = vmatpush1.msra.mxu0 0.0
    %1472 = vmatprep.subr.mxu0 0.0
    %1473 = vmatpush1.msra.mxu0 0.0
    %1474 = vmatprep.subr.mxu0 0.0
    %1475 = vmatpush1.msra.mxu0 0.0
    %1476 = vmatprep.subr.mxu0 0.0
    %1477 = vmatpush1.msra.mxu0 0.0
    %1478 = vmatprep.subr.mxu0 0.0
    %1479 = vmatpush1.msra.mxu0 0.0
    %1480 = vmatprep.subr.mxu0 0.0
    %1481 = vmatpush1.msra.mxu0 0.0
    %1482 = vmatprep.subr.mxu0 0.0
    %1483 = vmatpush1.msra.mxu0 0.0
    %1484 = vmatprep.subr.mxu0 0.0
    %1485 = vmatpush1.msra.mxu0 0.0
    %1486 = vmatprep.subr.mxu0 0.0
    %1487 = vmatpush1.msra.mxu0 0.0
    %1488 = vmatprep.mubr.f32.mxu0 0.0
    %1489 = vmatmul.mubr.f32.gmra.mrb[0].mxu0 %v1352
    %v1490 = vpop.f32.mrb[0].mxu0
    %v1491 = vadd.f32 0.0, %v1490
    %v1492 = vpop.f32.mrb[0].mxu0
    %1493 = vdwg.mxu0
    %v1494 = vadd.f32 %v1344, %v1421
    %v1495 = vxor.u32 %v1494, 2147483648
    %v1496 = vmul.f32 %v1495, 1.442695
    %v1497 = vpow.pop %v1496
    %v1498 = vadd.f32 %v1497, 1.0
    %v1499 = vrcp.pop %v1498
    %v1500 = vmul.f32 1.0, %v1499
    %v1501 = vadd.f32 %v1346, %v1491
    %v1502 = vxor.u32 %v1501, 2147483648
    %v1503 = vmul.f32 %v1502, 1.442695
    %v1504 = vpow.pop %v1503
    %v1505 = vadd.f32 %v1504, 1.0
    %v1506 = vrcp.pop %v1505
    %v1507 = vmul.f32 1.0, %v1506
    %1508 = vmatprep.subr.mxu0 0.0
    %1509 = vmatpush1.msra.mxu0 %v113
    %1510 = vmatprep.subr.mxu0 0.0
    %1511 = vmatpush1.msra.mxu0 %v114
    %1512 = vmatprep.subr.mxu0 0.0
    %1513 = vmatpush1.msra.mxu0 %v115
    %1514 = vmatprep.subr.mxu0 0.0
    %1515 = vmatpush1.msra.mxu0 %v116
    %1516 = vmatprep.subr.mxu0 0.0
    %1517 = vmatpush1.msra.mxu0 0.0
    %1518 = vmatprep.subr.mxu0 0.0
    %1519 = vmatpush1.msra.mxu0 0.0
    %1520 = vmatprep.subr.mxu0 0.0
    %1521 = vmatpush1.msra.mxu0 0.0
    %1522 = vmatprep.subr.mxu0 0.0
    %1523 = vmatpush1.msra.mxu0 0.0
    %1524 = vmatprep.subr.mxu0 0.0
    %1525 = vmatpush1.msra.mxu0 0.0
    %1526 = vmatprep.subr.mxu0 0.0
    %1527 = vmatpush1.msra.mxu0 0.0
    %1528 = vmatprep.subr.mxu0 0.0
    %1529 = vmatpush1.msra.mxu0 0.0
    %1530 = vmatprep.subr.mxu0 0.0
    %1531 = vmatpush1.msra.mxu0 0.0
    %1532 = vmatprep.subr.mxu0 0.0
    %1533 = vmatpush1.msra.mxu0 0.0
    %1534 = vmatprep.subr.mxu0 0.0
    %1535 = vmatpush1.msra.mxu0 0.0
    %1536 = vmatprep.subr.mxu0 0.0
    %1537 = vmatpush1.msra.mxu0 0.0
    %1538 = vmatprep.subr.mxu0 0.0
    %1539 = vmatpush1.msra.mxu0 0.0
    %1540 = vmatprep.subr.mxu0 0.0
    %1541 = vmatpush1.msra.mxu0 0.0
    %1542 = vmatprep.subr.mxu0 0.0
    %1543 = vmatpush1.msra.mxu0 0.0
    %1544 = vmatprep.subr.mxu0 0.0
    %1545 = vmatpush1.msra.mxu0 0.0
    %1546 = vmatprep.subr.mxu0 0.0
    %1547 = vmatpush1.msra.mxu0 0.0
    %1548 = vmatprep.subr.mxu0 0.0
    %1549 = vmatpush1.msra.mxu0 0.0
    %1550 = vmatprep.subr.mxu0 0.0
    %1551 = vmatpush1.msra.mxu0 0.0
    %1552 = vmatprep.subr.mxu0 0.0
    %1553 = vmatpush1.msra.mxu0 0.0
    %1554 = vmatprep.subr.mxu0 0.0
    %1555 = vmatpush1.msra.mxu0 0.0
    %1556 = vmatprep.subr.mxu0 0.0
    %1557 = vmatpush1.msra.mxu0 0.0
    %1558 = vmatprep.subr.mxu0 0.0
    %1559 = vmatpush1.msra.mxu0 0.0
    %1560 = vmatprep.subr.mxu0 0.0
    %1561 = vmatpush1.msra.mxu0 0.0
    %1562 = vmatprep.subr.mxu0 0.0
    %1563 = vmatpush1.msra.mxu0 0.0
    %1564 = vmatprep.subr.mxu0 0.0
    %1565 = vmatpush1.msra.mxu0 0.0
    %1566 = vmatprep.subr.mxu0 0.0
    %1567 = vmatpush1.msra.mxu0 0.0
    %1568 = vmatprep.subr.mxu0 0.0
    %1569 = vmatpush1.msra.mxu0 0.0
    %1570 = vmatprep.subr.mxu0 0.0
    %1571 = vmatpush1.msra.mxu0 0.0
    %1572 = vmatprep.mubr.f32.mxu0 0.0
    %1573 = vmatmul.mubr.f32.gmra.mrb[0].mxu0 %v1352
    %v1574 = vpop.f32.mrb[0].mxu0
    %v1575 = vadd.f32 %v287, %v1574
    %v1576 = vpop.f32.mrb[0].mxu0
    %1577 = vdwg.mxu0
    %v1578 = vmul.f32 %v1500, %v1575
    %v1579 = vadd.f32 %v1348, %v1578
    %v1580 = vtanh.pop %v1579
    %v1581 = vsub.f32 1.0, %v1507
    %v1582 = vmul.f32 %v1581, %v1580
    %v1583 = vmul.f32 %v1507, %v1340
    %v1584 = vadd.f32 %v1582, %v1583
    %v1585 = vmul.f32 %v1350, %v1584
    %v1586 = vadd.f32 %v1342, %v1585
    %s1587 = scalar_lea.vmem %s1, 50
    %v1588 = vld [vmem:[%s1587] sm:$0x3]
    %s1589 = scalar_lea.vmem %s1, 52
    %v1590 = vld [vmem:[%s1589] sm:$0x3]
    %s1591 = scalar_lea.vmem %s1, 54
    %v1592 = vld [vmem:[%s1591] sm:$0x3]
    %s1593 = scalar_lea.vmem %s1, 56
    %v1594 = vld [vmem:[%s1593] sm:$0x3]
    %v1596 = vsel %vm126, %v1584, 0
    %1598 = vmatprep.subr.mxu0 0.0
    %1599 = vmatpush1.msra.mxu0 %v105
    %1600 = vmatprep.subr.mxu0 0.0
    %1601 = vmatpush1.msra.mxu0 %v106
    %1602 = vmatprep.subr.mxu0 0.0
    %1603 = vmatpush1.msra.mxu0 %v107
    %1604 = vmatprep.subr.mxu0 0.0
    %1605 = vmatpush1.msra.mxu0 %v108
    %1606 = vmatprep.subr.mxu0 0.0
    %1607 = vmatpush1.msra.mxu0 0.0
    %1608 = vmatprep.subr.mxu0 0.0
    %1609 = vmatpush1.msra.mxu0 0.0
    %1610 = vmatprep.subr.mxu0 0.0
    %1611 = vmatpush1.msra.mxu0 0.0
    %1612 = vmatprep.subr.mxu0 0.0
    %1613 = vmatpush1.msra.mxu0 0.0
    %1614 = vmatprep.subr.mxu0 0.0
    %1615 = vmatpush1.msra.mxu0 0.0
    %1616 = vmatprep.subr.mxu0 0.0
    %1617 = vmatpush1.msra.mxu0 0.0
    %1618 = vmatprep.subr.mxu0 0.0
    %1619 = vmatpush1.msra.mxu0 0.0
    %1620 = vmatprep.subr.mxu0 0.0
    %1621 = vmatpush1.msra.mxu0 0.0
    %1622 = vmatprep.subr.mxu0 0.0
    %1623 = vmatpush1.msra.mxu0 0.0
    %1624 = vmatprep.subr.mxu0 0.0
    %1625 = vmatpush1.msra.mxu0 0.0
    %1626 = vmatprep.subr.mxu0 0.0
    %1627 = vmatpush1.msra.mxu0 0.0
    %1628 = vmatprep.subr.mxu0 0.0
    %1629 = vmatpush1.msra.mxu0 0.0
    %1630 = vmatprep.subr.mxu0 0.0
    %1631 = vmatpush1.msra.mxu0 0.0
    %1632 = vmatprep.subr.mxu0 0.0
    %1633 = vmatpush1.msra.mxu0 0.0
    %1634 = vmatprep.subr.mxu0 0.0
    %1635 = vmatpush1.msra.mxu0 0.0
    %1636 = vmatprep.subr.mxu0 0.0
    %1637 = vmatpush1.msra.mxu0 0.0
    %1638 = vmatprep.subr.mxu0 0.0
    %1639 = vmatpush1.msra.mxu0 0.0
    %1640 = vmatprep.subr.mxu0 0.0
    %1641 = vmatpush1.msra.mxu0 0.0
    %1642 = vmatprep.subr.mxu0 0.0
    %1643 = vmatpush1.msra.mxu0 0.0
    %1644 = vmatprep.subr.mxu0 0.0
    %1645 = vmatpush1.msra.mxu0 0.0
    %1646 = vmatprep.subr.mxu0 0.0
    %1647 = vmatpush1.msra.mxu0 0.0
    %1648 = vmatprep.subr.mxu0 0.0
    %1649 = vmatpush1.msra.mxu0 0.0
    %1650 = vmatprep.subr.mxu0 0.0
    %1651 = vmatpush1.msra.mxu0 0.0
    %1652 = vmatprep.subr.mxu0 0.0
    %1653 = vmatpush1.msra.mxu0 0.0
    %1654 = vmatprep.subr.mxu0 0.0
    %1655 = vmatpush1.msra.mxu0 0.0
    %1656 = vmatprep.subr.mxu0 0.0
    %1657 = vmatpush1.msra.mxu0 0.0
    %1658 = vmatprep.subr.mxu0 0.0
    %1659 = vmatpush1.msra.mxu0 0.0
    %1660 = vmatprep.subr.mxu0 0.0
    %1661 = vmatpush1.msra.mxu0 0.0
    %1662 = vmatprep.mubr.f32.mxu0 0.0
    %1663 = vmatmul.mubr.f32.gmra.mrb[0].mxu0 %v1596
    %v1664 = vpop.f32.mrb[0].mxu0
    %v1665 = vadd.f32 0.0, %v1664
    %v1666 = vpop.f32.mrb[0].mxu0
    %1667 = vdwg.mxu0
    %1668 = vmatprep.subr.mxu0 0.0
    %1669 = vmatpush1.msra.mxu0 %v109
    %1670 = vmatprep.subr.mxu0 0.0
    %1671 = vmatpush1.msra.mxu0 %v110
    %1672 = vmatprep.subr.mxu0 0.0
    %1673 = vmatpush1.msra.mxu0 %v111
    %1674 = vmatprep.subr.mxu0 0.0
    %1675 = vmatpush1.msra.mxu0 %v112
    %1676 = vmatprep.subr.mxu0 0.0
    %1677 = vmatpush1.msra.mxu0 0.0
    %1678 = vmatprep.subr.mxu0 0.0
    %1679 = vmatpush1.msra.mxu0 0.0
    %1680 = vmatprep.subr.mxu0 0.0
    %1681 = vmatpush1.msra.mxu0 0.0
    %1682 = vmatprep.subr.mxu0 0.0
    %1683 = vmatpush1.msra.mxu0 0.0
    %1684 = vmatprep.subr.mxu0 0.0
    %1685 = vmatpush1.msra.mxu0 0.0
    %1686 = vmatprep.subr.mxu0 0.0
    %1687 = vmatpush1.msra.mxu0 0.0
    %1688 = vmatprep.subr.mxu0 0.0
    %1689 = vmatpush1.msra.mxu0 0.0
    %1690 = vmatprep.subr.mxu0 0.0
    %1691 = vmatpush1.msra.mxu0 0.0
    %1692 = vmatprep.subr.mxu0 0.0
    %1693 = vmatpush1.msra.mxu0 0.0
    %1694 = vmatprep.subr.mxu0 0.0
    %1695 = vmatpush1.msra.mxu0 0.0
    %1696 = vmatprep.subr.mxu0 0.0
    %1697 = vmatpush1.msra.mxu0 0.0
    %1698 = vmatprep.subr.mxu0 0.0
    %1699 = vmatpush1.msra.mxu0 0.0
    %1700 = vmatprep.subr.mxu0 0.0
    %1701 = vmatpush1.msra.mxu0 0.0
    %1702 = vmatprep.subr.mxu0 0.0
    %1703 = vmatpush1.msra.mxu0 0.0
    %1704 = vmatprep.subr.mxu0 0.0
    %1705 = vmatpush1.msra.mxu0 0.0
    %1706 = vmatprep.subr.mxu0 0.0
    %1707 = vmatpush1.msra.mxu0 0.0
    %1708 = vmatprep.subr.mxu0 0.0
    %1709 = vmatpush1.msra.mxu0 0.0
    %1710 = vmatprep.subr.mxu0 0.0
    %1711 = vmatpush1.msra.mxu0 0.0
    %1712 = vmatprep.subr.mxu0 0.0
    %1713 = vmatpush1.msra.mxu0 0.0
    %1714 = vmatprep.subr.mxu0 0.0
    %1715 = vmatpush1.msra.mxu0 0.0
    %1716 = vmatprep.subr.mxu0 0.0
    %1717 = vmatpush1.msra.mxu0 0.0
    %1718 = vmatprep.subr.mxu0 0.0
    %1719 = vmatpush1.msra.mxu0 0.0
    %1720 = vmatprep.subr.mxu0 0.0
    %1721 = vmatpush1.msra.mxu0 0.0
    %1722 = vmatprep.subr.mxu0 0.0
    %1723 = vmatpush1.msra.mxu0 0.0
    %1724 = vmatprep.subr.mxu0 0.0
    %1725 = vmatpush1.msra.mxu0 0.0
    %1726 = vmatprep.subr.mxu0 0.0
    %1727 = vmatpush1.msra.mxu0 0.0
    %1728 = vmatprep.subr.mxu0 0.0
    %1729 = vmatpush1.msra.mxu0 0.0
    %1730 = vmatprep.subr.mxu0 0.0
    %1731 = vmatpush1.msra.mxu0 0.0
    %1732 = vmatprep.mubr.f32.mxu0 0.0
    %1733 = vmatmul.mubr.f32.gmra.mrb[0].mxu0 %v1596
    %v1734 = vpop.f32.mrb[0].mxu0
    %v1735 = vadd.f32 0.0, %v1734
    %v1736 = vpop.f32.mrb[0].mxu0
    %1737 = vdwg.mxu0
    %v1738 = vadd.f32 %v1588, %v1665
    %v1739 = vxor.u32 %v1738, 2147483648
    %v1740 = vmul.f32 %v1739, 1.442695
    %v1741 = vpow.pop %v1740
    %v1742 = vadd.f32 %v1741, 1.0
    %v1743 = vrcp.pop %v1742
    %v1744 = vmul.f32 1.0, %v1743
    %v1745 = vadd.f32 %v1590, %v1735
    %v1746 = vxor.u32 %v1745, 2147483648
    %v1747 = vmul.f32 %v1746, 1.442695
    %v1748 = vpow.pop %v1747
    %v1749 = vadd.f32 %v1748, 1.0
    %v1750 = vrcp.pop %v1749
    %v1751 = vmul.f32 1.0, %v1750
    %1752 = vmatprep.subr.mxu0 0.0
    %1753 = vmatpush1.msra.mxu0 %v113
    %1754 = vmatprep.subr.mxu0 0.0
    %1755 = vmatpush1.msra.mxu0 %v114
    %1756 = vmatprep.subr.mxu0 0.0
    %1757 = vmatpush1.msra.mxu0 %v115
    %1758 = vmatprep.subr.mxu0 0.0
    %1759 = vmatpush1.msra.mxu0 %v116
    %1760 = vmatprep.subr.mxu0 0.0
    %1761 = vmatpush1.msra.mxu0 0.0
    %1762 = vmatprep.subr.mxu0 0.0
    %1763 = vmatpush1.msra.mxu0 0.0
    %1764 = vmatprep.subr.mxu0 0.0
    %1765 = vmatpush1.msra.mxu0 0.0
    %1766 = vmatprep.subr.mxu0 0.0
    %1767 = vmatpush1.msra.mxu0 0.0
    %1768 = vmatprep.subr.mxu0 0.0
    %1769 = vmatpush1.msra.mxu0 0.0
    %1770 = vmatprep.subr.mxu0 0.0
    %1771 = vmatpush1.msra.mxu0 0.0
    %1772 = vmatprep.subr.mxu0 0.0
    %1773 = vmatpush1.msra.mxu0 0.0
    %1774 = vmatprep.subr.mxu0 0.0
    %1775 = vmatpush1.msra.mxu0 0.0
    %1776 = vmatprep.subr.mxu0 0.0
    %1777 = vmatpush1.msra.mxu0 0.0
    %1778 = vmatprep.subr.mxu0 0.0
    %1779 = vmatpush1.msra.mxu0 0.0
    %1780 = vmatprep.subr.mxu0 0.0
    %1781 = vmatpush1.msra.mxu0 0.0
    %1782 = vmatprep.subr.mxu0 0.0
    %1783 = vmatpush1.msra.mxu0 0.0
    %1784 = vmatprep.subr.mxu0 0.0
    %1785 = vmatpush1.msra.mxu0 0.0
    %1786 = vmatprep.subr.mxu0 0.0
    %1787 = vmatpush1.msra.mxu0 0.0
    %1788 = vmatprep.subr.mxu0 0.0
    %1789 = vmatpush1.msra.mxu0 0.0
    %1790 = vmatprep.subr.mxu0 0.0
    %1791 = vmatpush1.msra.mxu0 0.0
    %1792 = vmatprep.subr.mxu0 0.0
    %1793 = vmatpush1.msra.mxu0 0.0
    %1794 = vmatprep.subr.mxu0 0.0
    %1795 = vmatpush1.msra.mxu0 0.0
    %1796 = vmatprep.subr.mxu0 0.0
    %1797 = vmatpush1.msra.mxu0 0.0
    %1798 = vmatprep.subr.mxu0 0.0
    %1799 = vmatpush1.msra.mxu0 0.0
    %1800 = vmatprep.subr.mxu0 0.0
    %1801 = vmatpush1.msra.mxu0 0.0
    %1802 = vmatprep.subr.mxu0 0.0
    %1803 = vmatpush1.msra.mxu0 0.0
    %1804 = vmatprep.subr.mxu0 0.0
    %1805 = vmatpush1.msra.mxu0 0.0
    %1806 = vmatprep.subr.mxu0 0.0
    %1807 = vmatpush1.msra.mxu0 0.0
    %1808 = vmatprep.subr.mxu0 0.0
    %1809 = vmatpush1.msra.mxu0 0.0
    %1810 = vmatprep.subr.mxu0 0.0
    %1811 = vmatpush1.msra.mxu0 0.0
    %1812 = vmatprep.subr.mxu0 0.0
    %1813 = vmatpush1.msra.mxu0 0.0
    %1814 = vmatprep.subr.mxu0 0.0
    %1815 = vmatpush1.msra.mxu0 0.0
    %1816 = vmatprep.mubr.f32.mxu0 0.0
    %1817 = vmatmul.mubr.f32.gmra.mrb[0].mxu0 %v1596
    %v1818 = vpop.f32.mrb[0].mxu0
    %v1819 = vadd.f32 %v287, %v1818
    %v1820 = vpop.f32.mrb[0].mxu0
    %1821 = vdwg.mxu0
    %v1822 = vmul.f32 %v1744, %v1819
    %v1823 = vadd.f32 %v1592, %v1822
    %v1824 = vtanh.pop %v1823
    %v1825 = vsub.f32 1.0, %v1751
    %v1826 = vmul.f32 %v1825, %v1824
    %v1827 = vmul.f32 %v1751, %v1584
    %v1828 = vadd.f32 %v1826, %v1827
    %v1829 = vmul.f32 %v1594, %v1828
    %v1830 = vadd.f32 %v1586, %v1829
    %s1831 = scalar_lea.vmem %s1, 58
    %v1832 = vld [vmem:[%s1831] sm:$0x3]
    %s1833 = scalar_lea.vmem %s1, 60
    %v1834 = vld [vmem:[%s1833] sm:$0x3]
    %s1835 = scalar_lea.vmem %s1, 62
    %v1836 = vld [vmem:[%s1835] sm:$0x3]
    %s1837 = scalar_lea.vmem %s1, 64
    %v1838 = vld [vmem:[%s1837] sm:$0x3]
    %v1840 = vsel %vm126, %v1828, 0
    %1842 = vmatprep.subr.mxu0 0.0
    %1843 = vmatpush1.msra.mxu0 %v105
    %1844 = vmatprep.subr.mxu0 0.0
    %1845 = vmatpush1.msra.mxu0 %v106
    %1846 = vmatprep.subr.mxu0 0.0
    %1847 = vmatpush1.msra.mxu0 %v107
    %1848 = vmatprep.subr.mxu0 0.0
    %1849 = vmatpush1.msra.mxu0 %v108
    %1850 = vmatprep.subr.mxu0 0.0
    %1851 = vmatpush1.msra.mxu0 0.0
    %1852 = vmatprep.subr.mxu0 0.0
    %1853 = vmatpush1.msra.mxu0 0.0
    %1854 = vmatprep.subr.mxu0 0.0
    %1855 = vmatpush1.msra.mxu0 0.0
    %1856 = vmatprep.subr.mxu0 0.0
    %1857 = vmatpush1.msra.mxu0 0.0
    %1858 = vmatprep.subr.mxu0 0.0
    %1859 = vmatpush1.msra.mxu0 0.0
    %1860 = vmatprep.subr.mxu0 0.0
    %1861 = vmatpush1.msra.mxu0 0.0
    %1862 = vmatprep.subr.mxu0 0.0
    %1863 = vmatpush1.msra.mxu0 0.0
    %1864 = vmatprep.subr.mxu0 0.0
    %1865 = vmatpush1.msra.mxu0 0.0
    %1866 = vmatprep.subr.mxu0 0.0
    %1867 = vmatpush1.msra.mxu0 0.0
    %1868 = vmatprep.subr.mxu0 0.0
    %1869 = vmatpush1.msra.mxu0 0.0
    %1870 = vmatprep.subr.mxu0 0.0
    %1871 = vmatpush1.msra.mxu0 0.0
    %1872 = vmatprep.subr.mxu0 0.0
    %1873 = vmatpush1.msra.mxu0 0.0
    %1874 = vmatprep.subr.mxu0 0.0
    %1875 = vmatpush1.msra.mxu0 0.0
    %1876 = vmatprep.subr.mxu0 0.0
    %1877 = vmatpush1.msra.mxu0 0.0
    %1878 = vmatprep.subr.mxu0 0.0
    %1879 = vmatpush1.msra.mxu0 0.0
    %1880 = vmatprep.subr.mxu0 0.0
    %1881 = vmatpush1.msra.mxu0 0.0
    %1882 = vmatprep.subr.mxu0 0.0
    %1883 = vmatpush1.msra.mxu0 0.0
    %1884 = vmatprep.subr.mxu0 0.0
    %1885 = vmatpush1.msra.mxu0 0.0
    %1886 = vmatprep.subr.mxu0 0.0
    %1887 = vmatpush1.msra.mxu0 0.0
    %1888 = vmatprep.subr.mxu0 0.0
    %1889 = vmatpush1.msra.mxu0 0.0
    %1890 = vmatprep.subr.mxu0 0.0
    %1891 = vmatpush1.msra.mxu0 0.0
    %1892 = vmatprep.subr.mxu0 0.0
    %1893 = vmatpush1.msra.mxu0 0.0
    %1894 = vmatprep.subr.mxu0 0.0
    %1895 = vmatpush1.msra.mxu0 0.0
    %1896 = vmatprep.subr.mxu0 0.0
    %1897 = vmatpush1.msra.mxu0 0.0
    %1898 = vmatprep.subr.mxu0 0.0
    %1899 = vmatpush1.msra.mxu0 0.0
    %1900 = vmatprep.subr.mxu0 0.0
    %1901 = vmatpush1.msra.mxu0 0.0
    %1902 = vmatprep.subr.mxu0 0.0
    %1903 = vmatpush1.msra.mxu0 0.0
    %1904 = vmatprep.subr.mxu0 0.0
    %1905 = vmatpush1.msra.mxu0 0.0
    %1906 = vmatprep.mubr.f32.mxu0 0.0
    %1907 = vmatmul.mubr.f32.gmra.mrb[0].mxu0 %v1840
    %v1908 = vpop.f32.mrb[0].mxu0
    %v1909 = vadd.f32 0.0, %v1908
    %v1910 = vpop.f32.mrb[0].mxu0
    %1911 = vdwg.mxu0
    %1912 = vmatprep.subr.mxu0 0.0
    %1913 = vmatpush1.msra.mxu0 %v109
    %1914 = vmatprep.subr.mxu0 0.0
    %1915 = vmatpush1.msra.mxu0 %v110
    %1916 = vmatprep.subr.mxu0 0.0
    %1917 = vmatpush1.msra.mxu0 %v111
    %1918 = vmatprep.subr.mxu0 0.0
    %1919 = vmatpush1.msra.mxu0 %v112
    %1920 = vmatprep.subr.mxu0 0.0
    %1921 = vmatpush1.msra.mxu0 0.0
    %1922 = vmatprep.subr.mxu0 0.0
    %1923 = vmatpush1.msra.mxu0 0.0
    %1924 = vmatprep.subr.mxu0 0.0
    %1925 = vmatpush1.msra.mxu0 0.0
    %1926 = vmatprep.subr.mxu0 0.0
    %1927 = vmatpush1.msra.mxu0 0.0
    %1928 = vmatprep.subr.mxu0 0.0
    %1929 = vmatpush1.msra.mxu0 0.0
    %1930 = vmatprep.subr.mxu0 0.0
    %1931 = vmatpush1.msra.mxu0 0.0
    %1932 = vmatprep.subr.mxu0 0.0
    %1933 = vmatpush1.msra.mxu0 0.0
    %1934 = vmatprep.subr.mxu0 0.0
    %1935 = vmatpush1.msra.mxu0 0.0
    %1936 = vmatprep.subr.mxu0 0.0
    %1937 = vmatpush1.msra.mxu0 0.0
    %1938 = vmatprep.subr.mxu0 0.0
    %1939 = vmatpush1.msra.mxu0 0.0
    %1940 = vmatprep.subr.mxu0 0.0
    %1941 = vmatpush1.msra.mxu0 0.0
    %1942 = vmatprep.subr.mxu0 0.0
    %1943 = vmatpush1.msra.mxu0 0.0
    %1944 = vmatprep.subr.mxu0 0.0
    %1945 = vmatpush1.msra.mxu0 0.0
    %1946 = vmatprep.subr.mxu0 0.0
    %1947 = vmatpush1.msra.mxu0 0.0
    %1948 = vmatprep.subr.mxu0 0.0
    %1949 = vmatpush1.msra.mxu0 0.0
    %1950 = vmatprep.subr.mxu0 0.0
    %1951 = vmatpush1.msra.mxu0 0.0
    %1952 = vmatprep.subr.mxu0 0.0
    %1953 = vmatpush1.msra.mxu0 0.0
    %1954 = vmatprep.subr.mxu0 0.0
    %1955 = vmatpush1.msra.mxu0 0.0
    %1956 = vmatprep.subr.mxu0 0.0
    %1957 = vmatpush1.msra.mxu0 0.0
    %1958 = vmatprep.subr.mxu0 0.0
    %1959 = vmatpush1.msra.mxu0 0.0
    %1960 = vmatprep.subr.mxu0 0.0
    %1961 = vmatpush1.msra.mxu0 0.0
    %1962 = vmatprep.subr.mxu0 0.0
    %1963 = vmatpush1.msra.mxu0 0.0
    %1964 = vmatprep.subr.mxu0 0.0
    %1965 = vmatpush1.msra.mxu0 0.0
    %1966 = vmatprep.subr.mxu0 0.0
    %1967 = vmatpush1.msra.mxu0 0.0
    %1968 = vmatprep.subr.mxu0 0.0
    %1969 = vmatpush1.msra.mxu0 0.0
    %1970 = vmatprep.subr.mxu0 0.0
    %1971 = vmatpush1.msra.mxu0 0.0
    %1972 = vmatprep.subr.mxu0 0.0
    %1973 = vmatpush1.msra.mxu0 0.0
    %1974 = vmatprep.subr.mxu0 0.0
    %1975 = vmatpush1.msra.mxu0 0.0
    %1976 = vmatprep.mubr.f32.mxu0 0.0
    %1977 = vmatmul.mubr.f32.gmra.mrb[0].mxu0 %v1840
    %v1978 = vpop.f32.mrb[0].mxu0
    %v1979 = vadd.f32 0.0, %v1978
    %v1980 = vpop.f32.mrb[0].mxu0
    %1981 = vdwg.mxu0
    %v1982 = vadd.f32 %v1832, %v1909
    %v1983 = vxor.u32 %v1982, 2147483648
    %v1984 = vmul.f32 %v1983, 1.442695
    %v1985 = vpow.pop %v1984
    %v1986 = vadd.f32 %v1985, 1.0
    %v1987 = vrcp.pop %v1986
    %v1988 = vmul.f32 1.0, %v1987
    %v1989 = vadd.f32 %v1834, %v1979
    %v1990 = vxor.u32 %v1989, 2147483648
    %v1991 = vmul.f32 %v1990, 1.442695
    %v1992 = vpow.pop %v1991
    %v1993 = vadd.f32 %v1992, 1.0
    %v1994 = vrcp.pop %v1993
    %v1995 = vmul.f32 1.0, %v1994
    %1996 = vmatprep.subr.mxu0 0.0
    %1997 = vmatpush1.msra.mxu0 %v113
    %1998 = vmatprep.subr.mxu0 0.0
    %1999 = vmatpush1.msra.mxu0 %v114
    %2000 = vmatprep.subr.mxu0 0.0
    %2001 = vmatpush1.msra.mxu0 %v115
    %2002 = vmatprep.subr.mxu0 0.0
    %2003 = vmatpush1.msra.mxu0 %v116
    %2004 = vmatprep.subr.mxu0 0.0
    %2005 = vmatpush1.msra.mxu0 0.0
    %2006 = vmatprep.subr.mxu0 0.0
    %2007 = vmatpush1.msra.mxu0 0.0
    %2008 = vmatprep.subr.mxu0 0.0
    %2009 = vmatpush1.msra.mxu0 0.0
    %2010 = vmatprep.subr.mxu0 0.0
    %2011 = vmatpush1.msra.mxu0 0.0
    %2012 = vmatprep.subr.mxu0 0.0
    %2013 = vmatpush1.msra.mxu0 0.0
    %2014 = vmatprep.subr.mxu0 0.0
    %2015 = vmatpush1.msra.mxu0 0.0
    %2016 = vmatprep.subr.mxu0 0.0
    %2017 = vmatpush1.msra.mxu0 0.0
    %2018 = vmatprep.subr.mxu0 0.0
    %2019 = vmatpush1.msra.mxu0 0.0
    %2020 = vmatprep.subr.mxu0 0.0
    %2021 = vmatpush1.msra.mxu0 0.0
    %2022 = vmatprep.subr.mxu0 0.0
    %2023 = vmatpush1.msra.mxu0 0.0
    %2024 = vmatprep.subr.mxu0 0.0
    %2025 = vmatpush1.msra.mxu0 0.0
    %2026 = vmatprep.subr.mxu0 0.0
    %2027 = vmatpush1.msra.mxu0 0.0
    %2028 = vmatprep.subr.mxu0 0.0
    %2029 = vmatpush1.msra.mxu0 0.0
    %2030 = vmatprep.subr.mxu0 0.0
    %2031 = vmatpush1.msra.mxu0 0.0
    %2032 = vmatprep.subr.mxu0 0.0
    %2033 = vmatpush1.msra.mxu0 0.0
    %2034 = vmatprep.subr.mxu0 0.0
    %2035 = vmatpush1.msra.mxu0 0.0
    %2036 = vmatprep.subr.mxu0 0.0
    %2037 = vmatpush1.msra.mxu0 0.0
    %2038 = vmatprep.subr.mxu0 0.0
    %2039 = vmatpush1.msra.mxu0 0.0
    %2040 = vmatprep.subr.mxu0 0.0
    %2041 = vmatpush1.msra.mxu0 0.0
    %2042 = vmatprep.subr.mxu0 0.0
    %2043 = vmatpush1.msra.mxu0 0.0
    %2044 = vmatprep.subr.mxu0 0.0
    %2045 = vmatpush1.msra.mxu0 0.0
    %2046 = vmatprep.subr.mxu0 0.0
    %2047 = vmatpush1.msra.mxu0 0.0
    %2048 = vmatprep.subr.mxu0 0.0
    %2049 = vmatpush1.msra.mxu0 0.0
    %2050 = vmatprep.subr.mxu0 0.0
    %2051 = vmatpush1.msra.mxu0 0.0
    %2052 = vmatprep.subr.mxu0 0.0
    %2053 = vmatpush1.msra.mxu0 0.0
    %2054 = vmatprep.subr.mxu0 0.0
    %2055 = vmatpush1.msra.mxu0 0.0
    %2056 = vmatprep.subr.mxu0 0.0
    %2057 = vmatpush1.msra.mxu0 0.0
    %2058 = vmatprep.subr.mxu0 0.0
    %2059 = vmatpush1.msra.mxu0 0.0
    %2060 = vmatprep.mubr.f32.mxu0 0.0
    %2061 = vmatmul.mubr.f32.gmra.mrb[0].mxu0 %v1840
    %v2062 = vpop.f32.mrb[0].mxu0
    %v2063 = vadd.f32 %v287, %v2062
    %v2064 = vpop.f32.mrb[0].mxu0
    %2065 = vdwg.mxu0
    %v2066 = vmul.f32 %v1988, %v2063
    %v2067 = vadd.f32 %v1836, %v2066
    %v2068 = vtanh.pop %v2067
    %v2069 = vsub.f32 1.0, %v1995
    %v2070 = vmul.f32 %v2069, %v2068
    %v2071 = vmul.f32 %v1995, %v1828
    %v2072 = vadd.f32 %v2070, %v2071
    %v2073 = vmul.f32 %v1838, %v2072
    %v2074 = vadd.f32 %v1830, %v2073
    %v2075 = vld [vmem:[%s0 + $0xf0] sm:$0xff]
    %v2076 = vld [vmem:[%s0 + $0xf8] sm:$0xff]
    %v2077 = vld [vmem:[%s0 + $0x100] sm:$0xff]
    %v2078 = vld [vmem:[%s0 + $0x108] sm:$0xff]
    %v2079 = vld [vmem:[%s0 + $0x110] sm:$0x1]
    %v2080 = vlaneseq
    %v2081 = vshrl.u32 %v2080, 7
    %v2082 = vsub.s32 0, %v2081
    %v2083 = vrot.slane %v2079, %v2082
    %v2085 = vsel %vm126, %v2074, 0
    %2087 = vmatprep.subr.mxu0 0.0
    %2088 = vmatpush1.msra.mxu0 %v2075
    %2089 = vmatprep.subr.mxu0 0.0
    %2090 = vmatpush1.msra.mxu0 %v2076
    %2091 = vmatprep.subr.mxu0 0.0
    %2092 = vmatpush1.msra.mxu0 %v2077
    %2093 = vmatprep.subr.mxu0 0.0
    %2094 = vmatpush1.msra.mxu0 %v2078
    %2095 = vmatprep.subr.mxu0 0.0
    %2096 = vmatpush1.msra.mxu0 0.0
    %2097 = vmatprep.subr.mxu0 0.0
    %2098 = vmatpush1.msra.mxu0 0.0
    %2099 = vmatprep.subr.mxu0 0.0
    %2100 = vmatpush1.msra.mxu0 0.0
    %2101 = vmatprep.subr.mxu0 0.0
    %2102 = vmatpush1.msra.mxu0 0.0
    %2103 = vmatprep.subr.mxu0 0.0
    %2104 = vmatpush1.msra.mxu0 0.0
    %2105 = vmatprep.subr.mxu0 0.0
    %2106 = vmatpush1.msra.mxu0 0.0
    %2107 = vmatprep.subr.mxu0 0.0
    %2108 = vmatpush1.msra.mxu0 0.0
    %2109 = vmatprep.subr.mxu0 0.0
    %2110 = vmatpush1.msra.mxu0 0.0
    %2111 = vmatprep.subr.mxu0 0.0
    %2112 = vmatpush1.msra.mxu0 0.0
    %2113 = vmatprep.subr.mxu0 0.0
    %2114 = vmatpush1.msra.mxu0 0.0
    %2115 = vmatprep.subr.mxu0 0.0
    %2116 = vmatpush1.msra.mxu0 0.0
    %2117 = vmatprep.subr.mxu0 0.0
    %2118 = vmatpush1.msra.mxu0 0.0
    %2119 = vmatprep.subr.mxu0 0.0
    %2120 = vmatpush1.msra.mxu0 0.0
    %2121 = vmatprep.subr.mxu0 0.0
    %2122 = vmatpush1.msra.mxu0 0.0
    %2123 = vmatprep.subr.mxu0 0.0
    %2124 = vmatpush1.msra.mxu0 0.0
    %2125 = vmatprep.subr.mxu0 0.0
    %2126 = vmatpush1.msra.mxu0 0.0
    %2127 = vmatprep.subr.mxu0 0.0
    %2128 = vmatpush1.msra.mxu0 0.0
    %2129 = vmatprep.subr.mxu0 0.0
    %2130 = vmatpush1.msra.mxu0 0.0
    %2131 = vmatprep.subr.mxu0 0.0
    %2132 = vmatpush1.msra.mxu0 0.0
    %2133 = vmatprep.subr.mxu0 0.0
    %2134 = vmatpush1.msra.mxu0 0.0
    %2135 = vmatprep.subr.mxu0 0.0
    %2136 = vmatpush1.msra.mxu0 0.0
    %2137 = vmatprep.subr.mxu0 0.0
    %2138 = vmatpush1.msra.mxu0 0.0
    %2139 = vmatprep.subr.mxu0 0.0
    %2140 = vmatpush1.msra.mxu0 0.0
    %2141 = vmatprep.subr.mxu0 0.0
    %2142 = vmatpush1.msra.mxu0 0.0
    %2143 = vmatprep.subr.mxu0 0.0
    %2144 = vmatpush1.msra.mxu0 0.0
    %2145 = vmatprep.subr.mxu0 0.0
    %2146 = vmatpush1.msra.mxu0 0.0
    %2147 = vmatprep.subr.mxu0 0.0
    %2148 = vmatpush1.msra.mxu0 0.0
    %2149 = vmatprep.subr.mxu0 0.0
    %2150 = vmatpush1.msra.mxu0 0.0
    %2151 = vmatprep.mubr.f32.mxu0 0.0
    %2152 = vmatmul.mubr.f32.gmra.mrb[0].mxu0 %v2085
    %v2153 = vpop.f32.mrb[0].mxu0
    %v2154 = vadd.f32 %v2083, %v2153
    %v2155 = vpop.f32.mrb[0].mxu0
    %2156 = vdwg.mxu0
    %v2157 = vmul.f32 %v104, %v2154
    %2159 = vrot.lane.b32.xlu0 %v101, 64
    %v2160 = vpop.permute.xlu0 %2159
    %v2162 = vadd.f32 %v2157, %v2160
    %v2163 = vmax.f32 %v2162, 0.0
    %v2164 = vadd.f32 %v2163, %v2074
    %v2166 = vsel %vm126, %v2164, 0
    %2168 = vmatprep.subr.mxu0 0.0
    %2169 = vmatpush1.msra.mxu0 %v2075
    %2170 = vmatprep.subr.mxu0 0.0
    %2171 = vmatpush1.msra.mxu0 %v2076
    %2172 = vmatprep.subr.mxu0 0.0
    %2173 = vmatpush1.msra.mxu0 %v2077
    %2174 = vmatprep.subr.mxu0 0.0
    %2175 = vmatpush1.msra.mxu0 %v2078
    %2176 = vmatprep.subr.mxu0 0.0
    %2177 = vmatpush1.msra.mxu0 0.0
    %2178 = vmatprep.subr.mxu0 0.0
    %2179 = vmatpush1.msra.mxu0 0.0
    %2180 = vmatprep.subr.mxu0 0.0
    %2181 = vmatpush1.msra.mxu0 0.0
    %2182 = vmatprep.subr.mxu0 0.0
    %2183 = vmatpush1.msra.mxu0 0.0
    %2184 = vmatprep.subr.mxu0 0.0
    %2185 = vmatpush1.msra.mxu0 0.0
    %2186 = vmatprep.subr.mxu0 0.0
    %2187 = vmatpush1.msra.mxu0 0.0
    %2188 = vmatprep.subr.mxu0 0.0
    %2189 = vmatpush1.msra.mxu0 0.0
    %2190 = vmatprep.subr.mxu0 0.0
    %2191 = vmatpush1.msra.mxu0 0.0
    %2192 = vmatprep.subr.mxu0 0.0
    %2193 = vmatpush1.msra.mxu0 0.0
    %2194 = vmatprep.subr.mxu0 0.0
    %2195 = vmatpush1.msra.mxu0 0.0
    %2196 = vmatprep.subr.mxu0 0.0
    %2197 = vmatpush1.msra.mxu0 0.0
    %2198 = vmatprep.subr.mxu0 0.0
    %2199 = vmatpush1.msra.mxu0 0.0
    %2200 = vmatprep.subr.mxu0 0.0
    %2201 = vmatpush1.msra.mxu0 0.0
    %2202 = vmatprep.subr.mxu0 0.0
    %2203 = vmatpush1.msra.mxu0 0.0
    %2204 = vmatprep.subr.mxu0 0.0
    %2205 = vmatpush1.msra.mxu0 0.0
    %2206 = vmatprep.subr.mxu0 0.0
    %2207 = vmatpush1.msra.mxu0 0.0
    %2208 = vmatprep.subr.mxu0 0.0
    %2209 = vmatpush1.msra.mxu0 0.0
    %2210 = vmatprep.subr.mxu0 0.0
    %2211 = vmatpush1.msra.mxu0 0.0
    %2212 = vmatprep.subr.mxu0 0.0
    %2213 = vmatpush1.msra.mxu0 0.0
    %2214 = vmatprep.subr.mxu0 0.0
    %2215 = vmatpush1.msra.mxu0 0.0
    %2216 = vmatprep.subr.mxu0 0.0
    %2217 = vmatpush1.msra.mxu0 0.0
    %2218 = vmatprep.subr.mxu0 0.0
    %2219 = vmatpush1.msra.mxu0 0.0
    %2220 = vmatprep.subr.mxu0 0.0
    %2221 = vmatpush1.msra.mxu0 0.0
    %2222 = vmatprep.subr.mxu0 0.0
    %2223 = vmatpush1.msra.mxu0 0.0
    %2224 = vmatprep.subr.mxu0 0.0
    %2225 = vmatpush1.msra.mxu0 0.0
    %2226 = vmatprep.subr.mxu0 0.0
    %2227 = vmatpush1.msra.mxu0 0.0
    %2228 = vmatprep.subr.mxu0 0.0
    %2229 = vmatpush1.msra.mxu0 0.0
    %2230 = vmatprep.subr.mxu0 0.0
    %2231 = vmatpush1.msra.mxu0 0.0
    %2232 = vmatprep.mubr.f32.mxu0 0.0
    %2233 = vmatmul.mubr.f32.gmra.mrb[0].mxu0 %v2166
    %v2234 = vpop.f32.mrb[0].mxu0
    %v2235 = vadd.f32 %v2083, %v2234
    %v2236 = vpop.f32.mrb[0].mxu0
    %2237 = vdwg.mxu0
    %2239 = vrot.lane.b32.xlu0 %v2235, 32
    %v2240 = vpop.permute.xlu0 %2239
    %v2242 = vmul.f32 %v104, %v2240
    %v2243 = vadd.f32 %v2242, %v2160
    %v2244 = vmax.f32 %v2243, 0.0
    %2245 = vrot.lane.b32.xlu0 %v2164, 32
    %v2246 = vpop.permute.xlu0 %2245
    %v2248 = vadd.f32 %v2244, %v2246
    %v2249 = vld [vmem:[%s0 + $0x118] sm:$0xff]
    %v2250 = vld [vmem:[%s0 + $0x120] sm:$0xff]
    %v2251 = vld [vmem:[%s0 + $0x128] sm:$0xff]
    %v2252 = vld [vmem:[%s0 + $0x130] sm:$0xff]
    %v2253 = vld [vmem:[%s0 + $0x138] sm:$0x1]
    %v2254 = vlaneseq
    %v2255 = vshrl.u32 %v2254, 7
    %v2256 = vsub.s32 0, %v2255
    %v2257 = vrot.slane %v2253, %v2256
    %2259 = vrot.lane.b32.xlu0 %v2248, 96
    %v2260 = vpop.permute.xlu0 %2259
    %v2261 = vsel %vm126, %v2260, 0
    %2263 = vmatprep.subr.mxu0 0.0
    %2264 = vmatpush1.msra.mxu0 %v2249
    %2265 = vmatprep.subr.mxu0 0.0
    %2266 = vmatpush1.msra.mxu0 %v2250
    %2267 = vmatprep.subr.mxu0 0.0
    %2268 = vmatpush1.msra.mxu0 %v2251
    %2269 = vmatprep.subr.mxu0 0.0
    %2270 = vmatpush1.msra.mxu0 %v2252
    %2271 = vmatprep.subr.mxu0 0.0
    %2272 = vmatpush1.msra.mxu0 0.0
    %2273 = vmatprep.subr.mxu0 0.0
    %2274 = vmatpush1.msra.mxu0 0.0
    %2275 = vmatprep.subr.mxu0 0.0
    %2276 = vmatpush1.msra.mxu0 0.0
    %2277 = vmatprep.subr.mxu0 0.0
    %2278 = vmatpush1.msra.mxu0 0.0
    %2279 = vmatprep.subr.mxu0 0.0
    %2280 = vmatpush1.msra.mxu0 0.0
    %2281 = vmatprep.subr.mxu0 0.0
    %2282 = vmatpush1.msra.mxu0 0.0
    %2283 = vmatprep.subr.mxu0 0.0
    %2284 = vmatpush1.msra.mxu0 0.0
    %2285 = vmatprep.subr.mxu0 0.0
    %2286 = vmatpush1.msra.mxu0 0.0
    %2287 = vmatprep.subr.mxu0 0.0
    %2288 = vmatpush1.msra.mxu0 0.0
    %2289 = vmatprep.subr.mxu0 0.0
    %2290 = vmatpush1.msra.mxu0 0.0
    %2291 = vmatprep.subr.mxu0 0.0
    %2292 = vmatpush1.msra.mxu0 0.0
    %2293 = vmatprep.subr.mxu0 0.0
    %2294 = vmatpush1.msra.mxu0 0.0
    %2295 = vmatprep.subr.mxu0 0.0
    %2296 = vmatpush1.msra.mxu0 0.0
    %2297 = vmatprep.subr.mxu0 0.0
    %2298 = vmatpush1.msra.mxu0 0.0
    %2299 = vmatprep.subr.mxu0 0.0
    %2300 = vmatpush1.msra.mxu0 0.0
    %2301 = vmatprep.subr.mxu0 0.0
    %2302 = vmatpush1.msra.mxu0 0.0
    %2303 = vmatprep.subr.mxu0 0.0
    %2304 = vmatpush1.msra.mxu0 0.0
    %2305 = vmatprep.subr.mxu0 0.0
    %2306 = vmatpush1.msra.mxu0 0.0
    %2307 = vmatprep.subr.mxu0 0.0
    %2308 = vmatpush1.msra.mxu0 0.0
    %2309 = vmatprep.subr.mxu0 0.0
    %2310 = vmatpush1.msra.mxu0 0.0
    %2311 = vmatprep.subr.mxu0 0.0
    %2312 = vmatpush1.msra.mxu0 0.0
    %2313 = vmatprep.subr.mxu0 0.0
    %2314 = vmatpush1.msra.mxu0 0.0
    %2315 = vmatprep.subr.mxu0 0.0
    %2316 = vmatpush1.msra.mxu0 0.0
    %2317 = vmatprep.subr.mxu0 0.0
    %2318 = vmatpush1.msra.mxu0 0.0
    %2319 = vmatprep.subr.mxu0 0.0
    %2320 = vmatpush1.msra.mxu0 0.0
    %2321 = vmatprep.subr.mxu0 0.0
    %2322 = vmatpush1.msra.mxu0 0.0
    %2323 = vmatprep.subr.mxu0 0.0
    %2324 = vmatpush1.msra.mxu0 0.0
    %2325 = vmatprep.subr.mxu0 0.0
    %2326 = vmatpush1.msra.mxu0 0.0
    %2327 = vmatprep.mubr.f32.mxu0 0.0
    %2328 = vmatmul.mubr.f32.gmra.mrb[0].mxu0 %v2261
    %v2329 = vpop.f32.mrb[0].mxu0
    %v2330 = vadd.f32 %v2257, %v2329
    %v2331 = vpop.f32.mrb[0].mxu0
    %2332 = vdwg.mxu0
    %2333 = vst [vmem:[#allocation2] sm:$0x3] %v2330
    // Predicated region
    $region10: #{mem_net_forward.1} parent=1 // pred_check
      _
    $region11: #{mem_net_forward.1} parent=1 // pred_check_branch
      %2335 = sbr.rel (0) target = $region13
    $region12: #{mem_net_forward.1} parent=1 // pred_region
      %s2337 = ssub.s32 32, 32
      %2338 = vsyncadd [#allocation3], %s2337
      %s2340 = sshll.u32 [#allocation2], 4
      %s2341 = int_to_ptr.vmem [resolvable:$true] %s2340
      %2343 = dma.vmem_to_hbm [thread:$0]  %s2341, 32, %s2, [#allocation3]
    $region13: #{mem_net_forward.1} parent=1 // pred_fallthru
      _
    // Predicated region
    $region14: #{mem_net_forward.1} parent=1 // pred_check
      _
    $region15: #{mem_net_forward.1} parent=1 // pred_check_branch
      %2345 = sbr.rel (0) target = $region17
    $region16: #{mem_net_forward.1} parent=1 // pred_region
      %2346 = dma.done [#allocation3], 32
    $region17: #{mem_net_forward.1} parent=1 // pred_fallthru
      _
    %2347 = vsyncpa [#allocation3], 1

</llo_original>
